<compile_context>
chip_gen: v6e
topology: v6e:2x2x1
jax: 0.10.0
libtpu: 0.0.40
codegen_flags: <defaults>
</compile_context>

<pallas_src>
from functools import partial

import jax
import jax.numpy as jnp
from jax import lax
from jax.experimental import pallas as pl
from jax.experimental.pallas import tpu as pltpu


def _lstm_kernel(x_ref, wx_ref, bbig_ref, wbig_ref, wfc_ref, bfc_ref, out_ref,
                 *, seq_len, batch):
    T, B = seq_len, batch
    H2, G8 = wbig_ref.shape          # (2H, 8H)
    H = H2 // 2
    H6 = 3 * H2

    bbig = bbig_ref[...]             # (1, 8H) f32: [b1 | b2] interleaved per gate
    wbig = wbig_ref[...]             # (2H, 8H) bf16 fused recurrent weight

    # ---- prologue: input projection for ALL timesteps in one MXU pass -----------
    # Row t*B+b of gx: layer-1 gate cols = x[b,t] @ W_ih_l0^T + b1, layer-2 cols = b2.
    gx = (jnp.dot(x_ref[...], wx_ref[...], preferred_element_type=jnp.float32)
          + bbig)                    # (T*B, 8H) f32

    def joint_cell(gates, c):
        # gates cols [i1,i2 | f1,f2 | o1,o2 | g1,g2]; every slice is a whole
        # 128-lane tile -> pure VPU/EUP work, no cross-lane shuffles.
        s = jax.nn.sigmoid(gates[:, :H6])
        g = jnp.tanh(gates[:, H6:])
        i = s[:, :H2]
        f = s[:, H2:2 * H2]
        o = s[:, 2 * H2:H6]
        c_new = f * c + i * g
        h_new = o * jnp.tanh(c_new)
        return h_new, c_new          # halves: [layer1 | layer2]

    # ---- t = 0: both layers start from zero state; only the layer-1 half is real --
    zeros2h = jnp.zeros((B, H2), jnp.float32)
    h_raw, c_raw = joint_cell(gx[0:B, :], zeros2h)
    l1_mask = lax.broadcasted_iota(jnp.int32, (B, H2), 1) < H
    h_cat = jnp.where(l1_mask, h_raw, 0.0)       # [h1(0) | h2(-1)=0]
    c_cat = jnp.where(l1_mask, c_raw, 0.0)       # [c1(0) | c2(-1)=0]

    bbig_b = jnp.broadcast_to(bbig, (B, G8))     # hoisted; only used at the last step

    # ---- fused recurrence: ONE (B,2H)x(2H,8H) bf16 MXU dot per timestep ----------
    # Iteration t consumes [h1(t), h2(t-1)] and produces [h1(t+1), h2(t)].
    for t in range(T):
        if t + 1 < T:
            add = gx[(t + 1) * B:(t + 2) * B, :]     # off the serial dependence chain
        else:
            add = bbig_b                             # h1(T) is discarded; keep finite
        gates = jnp.dot(h_cat.astype(jnp.bfloat16), wbig,
                        preferred_element_type=jnp.float32) + add
        h_cat, c_cat = joint_cell(gates, c_cat)

    # ---- final FC on h2(T-1): rows 0:H of wfc are zero so the junk h1(T) half
    # contributes nothing; lane-dense (B,128) output, sliced in the wrapper.
    out_ref[...] = (jnp.dot(h_cat, wfc_ref[...], preferred_element_type=jnp.float32)
                    + bfc_ref[...]).astype(out_ref.dtype)


def olympic_lstm_forward(x, params, hidden_size=64):
    """x: (B, T, I) float32 (batch_first, like the PyTorch module). Returns (B, 3)."""
    B, T, I = x.shape
    H = hidden_size
    H2, G8 = 2 * H, 8 * H
    OUT_PAD = 128
    n_out = params["w_fc"].shape[0]
    I_PAD = 8                                    # pad contraction dim for alignment

    def reorder(w):
        # PyTorch gate-block order [i, f, g, o] -> [i, f, o, g] along the last axis.
        i, f, g, o = jnp.split(w, 4, axis=-1)
        return jnp.concatenate([i, f, o, g], axis=-1)

    def interleave(a, b):
        # a, b: (R, 4H), gate blocks [i,f,o,g] -> (R, 8H) blocks
        # [i_a, i_b, f_a, f_b, o_a, o_b, g_a, g_b]  (a = layer-1, b = layer-2 columns)
        R = a.shape[0]
        return jnp.stack([a.reshape(R, 4, H), b.reshape(R, 4, H)],
                         axis=2).reshape(R, G8)

    # --- host-side weight prep ---------------------------------------------------
    zeros4h = lambda r: jnp.zeros((r, 4 * H), jnp.float32)

    # input-projection weight: layer-1 columns get W_ih_l0^T, layer-2 columns zero
    wx = jnp.zeros((I_PAD, G8), jnp.float32).at[:I].set(
        interleave(reorder(params["w_ih_l0"].T), zeros4h(I)))
    # per-gate interleaved bias: layer-1 cols b_ih_l0+b_hh_l0, layer-2 cols b_ih_l1+b_hh_l1
    bbig = interleave(reorder((params["b_ih_l0"] + params["b_hh_l0"])[None, :]),
                      reorder((params["b_ih_l1"] + params["b_hh_l1"])[None, :]))

    # fused per-step weight (2H, 8H): rows 0:H multiply h1(t), rows H:2H multiply h2(t-1)
    top = interleave(reorder(params["w_hh_l0"].T), reorder(params["w_ih_l1"].T))
    bot = interleave(zeros4h(H), reorder(params["w_hh_l1"].T))
    wbig = jnp.concatenate([top, bot], axis=0).astype(jnp.bfloat16)   # bf16 MXU operand

    # final FC, lane-dense: (2H, 128); top H rows zero (h1 half is ignored)
    wfc = jnp.zeros((H2, OUT_PAD), jnp.float32).at[H:, :n_out].set(params["w_fc"].T)
    bfc = jnp.zeros((1, OUT_PAD), jnp.float32).at[0, :n_out].set(params["b_fc"])

    # (B,T,I) -> (T*B, I_PAD) time-major rows, zero-padded feature dim
    x2d = jnp.zeros((T * B, I_PAD), jnp.float32).at[:, :I].set(
        jnp.transpose(x, (1, 0, 2)).reshape(T * B, I).astype(jnp.float32))

    kernel = partial(_lstm_kernel, seq_len=T, batch=B)
    full = lambda shape: pl.BlockSpec(shape, lambda s: (0,) * len(shape))

    out = pl.pallas_call(
        kernel,
        out_shape=jax.ShapeDtypeStruct((B, OUT_PAD), jnp.float32),
        grid_spec=pltpu.PrefetchScalarGridSpec(
            num_scalar_prefetch=0,
            grid=(1,),                       # single invocation; everything VMEM-resident
            in_specs=[
                full((T * B, I_PAD)),        # time-major inputs (padded features)
                full((I_PAD, G8)),           # input-projection weight (interleaved)
                full((1, G8)),               # interleaved biases [b1 | b2]
                full((H2, G8)),              # fused recurrent weight (bf16)
                full((H2, OUT_PAD)),         # padded FC weight
                full((1, OUT_PAD)),          # padded FC bias
            ],
            out_specs=pl.BlockSpec((B, OUT_PAD), lambda s: (0, 0)),
        ),
        compiler_params=pltpu.CompilerParams(
            dimension_semantics=("arbitrary",)),
    )(x2d, wx, bbig, wbig, wfc, bfc)
    return out[:, :n_out]


def olympic_lstm_ref(x, params, hidden_size=64):
    """Pure-JAX f32 reference matching nn.LSTM(batch_first=True) + Linear."""
    B, T, I = x.shape
    H = hidden_size
    h1 = jnp.zeros((B, H), jnp.float32)
    c1 = jnp.zeros((B, H), jnp.float32)
    h2 = jnp.zeros((B, H), jnp.float32)
    c2 = jnp.zeros((B, H), jnp.float32)

    def cell(inp, h, c, w_ih, w_hh, b_ih, b_hh):
        gates = inp @ w_ih.T + h @ w_hh.T + b_ih + b_hh
        i_g = jax.nn.sigmoid(gates[:, 0 * H:1 * H])
        f_g = jax.nn.sigmoid(gates[:, 1 * H:2 * H])
        g_g = jnp.tanh(gates[:, 2 * H:3 * H])
        o_g = jax.nn.sigmoid(gates[:, 3 * H:4 * H])
        c_new = f_g * c + i_g * g_g
        h_new = o_g * jnp.tanh(c_new)
        return h_new, c_new

    for t in range(T):
        xt = x[:, t, :]
        h1, c1 = cell(xt, h1, c1, params["w_ih_l0"], params["w_hh_l0"],
                      params["b_ih_l0"], params["b_hh_l0"])
        h2, c2 = cell(h1, h2, c2, params["w_ih_l1"], params["w_hh_l1"],
                      params["b_ih_l1"], params["b_hh_l1"])
    return h2 @ params["w_fc"].T + params["b_fc"]


def init_params(key, input_size=3, hidden_size=64):
    """Deterministic init mimicking PyTorch's uniform(-1/sqrt(H), 1/sqrt(H))."""
    H = hidden_size
    bound = 1.0 / jnp.sqrt(jnp.float32(H))
    shapes = {
        "w_ih_l0": (4 * H, input_size), "w_hh_l0": (4 * H, H),
        "b_ih_l0": (4 * H,), "b_hh_l0": (4 * H,),
        "w_ih_l1": (4 * H, H), "w_hh_l1": (4 * H, H),
        "b_ih_l1": (4 * H,), "b_hh_l1": (4 * H,),
        "w_fc": (3, H), "b_fc": (3,),
    }
    keys = jax.random.split(key, len(shapes))
    return {name: jax.random.uniform(k, shape, jnp.float32, -bound, bound)
            for k, (name, shape) in zip(keys, shapes.items())}


if __name__ == "__main__":
    B, T, I, H = 2, 8, 3, 64
    root = jax.random.PRNGKey(0)
    k_x, k_p = jax.random.split(root)
    x = jax.random.normal(k_x, (B, T, I), jnp.float32)
    params = init_params(k_p, input_size=I, hidden_size=H)

    out = olympic_lstm_forward(x, params, hidden_size=H)
    out = jax.block_until_ready(out)

    ref = olympic_lstm_ref(x, params, hidden_size=H)
    assert out.shape == (B, 3), out.shape
    # bf16 MXU operands accumulate rounding over the T-step recurrence -> loose tol.
    assert jnp.allclose(out, ref, atol=5e-2, rtol=5e-2), (out, ref)

    print("KERNEL_OK")
</pallas_src>

<mosaic_0001>
module attributes {stable_mosaic.version = 11 : i64} {
  func.func @_lstm_kernel(%arg0: i32, %arg1: memref<16x8xf32, #tpu.memory_space<vmem>>, %arg2: memref<8x512xf32, #tpu.memory_space<vmem>>, %arg3: memref<1x512xf32, #tpu.memory_space<vmem>>, %arg4: memref<128x512xbf16, #tpu.memory_space<vmem>>, %arg5: memref<128x128xf32, #tpu.memory_space<vmem>>, %arg6: memref<1x128xf32, #tpu.memory_space<vmem>>, %arg7: memref<2x128xf32, #tpu.memory_space<vmem>>) attributes {dimension_semantics = [#tpu.dimension_semantics<arbitrary>], iteration_bounds = array<i64: 1>, scalar_prefetch = 0 : i64, scratch_operands = 0 : i64, tpu.core_type = #tpu.core_type<tc>, window_params = [{pipeline_mode = #tpu.pipeline_mode<synchronous>, transform_indices = @transform_0, window_bounds = array<i64: 16, 8>}, {pipeline_mode = #tpu.pipeline_mode<synchronous>, transform_indices = @transform_1, window_bounds = array<i64: 8, 512>}, {pipeline_mode = #tpu.pipeline_mode<synchronous>, transform_indices = @transform_2, window_bounds = array<i64: 1, 512>}, {pipeline_mode = #tpu.pipeline_mode<synchronous>, transform_indices = @transform_3, window_bounds = array<i64: 128, 512>}, {pipeline_mode = #tpu.pipeline_mode<synchronous>, transform_indices = @transform_4, window_bounds = array<i64: 128, 128>}, {pipeline_mode = #tpu.pipeline_mode<synchronous>, transform_indices = @transform_5, window_bounds = array<i64: 1, 128>}, {pipeline_mode = #tpu.pipeline_mode<synchronous>, transform_indices = @transform_6, window_bounds = array<i64: 2, 128>}]} {
    %c0 = arith.constant 0 : index
    %c0_0 = arith.constant 0 : index
    %0 = vector.load %arg3[%c0, %c0_0] : memref<1x512xf32, #tpu.memory_space<vmem>>, vector<1x512xf32>
    %c0_1 = arith.constant 0 : index
    %c0_2 = arith.constant 0 : index
    %1 = vector.load %arg4[%c0_1, %c0_2] : memref<128x512xbf16, #tpu.memory_space<vmem>>, vector<128x512xbf16>
    %c0_3 = arith.constant 0 : index
    %c0_4 = arith.constant 0 : index
    %2 = vector.load %arg1[%c0_3, %c0_4] : memref<16x8xf32, #tpu.memory_space<vmem>>, vector<16x8xf32>
    %c0_5 = arith.constant 0 : index
    %c0_6 = arith.constant 0 : index
    %3 = vector.load %arg2[%c0_5, %c0_6] : memref<8x512xf32, #tpu.memory_space<vmem>>, vector<8x512xf32>
    %cst = arith.constant dense<0.000000e+00> : vector<16x512xf32>
    %4 = tpu.matmul %2, %3, %cst {dimension_numbers = #tpu.dot_dimension_numbers<[1], [0], [0], [1], [0, 0, 1, 1], [], []>} : vector<16x8xf32>, vector<8x512xf32>, vector<16x512xf32> -> vector<16x512xf32>
    %5 = vector.broadcast %0 : vector<1x512xf32> to vector<16x512xf32>
    %6 = arith.addf %4, %5 : vector<16x512xf32>
    %cst_7 = arith.constant 0.000000e+00 : f32
    %7 = vector.broadcast %cst_7 : f32 to vector<2x128xf32>
    %8 = vector.extract_strided_slice %6 {offsets = [0, 0], sizes = [2, 512], strides = [1, 1]} : vector<16x512xf32> to vector<2x512xf32>
    %9 = vector.extract_strided_slice %8 {offsets = [0, 0], sizes = [2, 384], strides = [1, 1]} : vector<2x512xf32> to vector<2x384xf32>
    %10 = arith.negf %9 : vector<2x384xf32>
    %11 = math.exp %10 : vector<2x384xf32>
    %cst_8 = arith.constant 1.000000e+00 : f32
    %12 = vector.broadcast %cst_8 : f32 to vector<2x384xf32>
    %13 = arith.addf %12, %11 : vector<2x384xf32>
    %14 = arith.divf %12, %13 : vector<2x384xf32>
    %15 = vector.extract_strided_slice %8 {offsets = [0, 384], sizes = [2, 128], strides = [1, 1]} : vector<2x512xf32> to vector<2x128xf32>
    %16 = math.tanh %15 : vector<2x128xf32>
    %17 = vector.extract_strided_slice %14 {offsets = [0, 0], sizes = [2, 128], strides = [1, 1]} : vector<2x384xf32> to vector<2x128xf32>
    %18 = vector.extract_strided_slice %14 {offsets = [0, 128], sizes = [2, 128], strides = [1, 1]} : vector<2x384xf32> to vector<2x128xf32>
    %19 = vector.extract_strided_slice %14 {offsets = [0, 256], sizes = [2, 128], strides = [1, 1]} : vector<2x384xf32> to vector<2x128xf32>
    %20 = arith.mulf %18, %7 : vector<2x128xf32>
    %21 = arith.mulf %17, %16 : vector<2x128xf32>
    %22 = arith.addf %20, %21 : vector<2x128xf32>
    %23 = math.tanh %22 : vector<2x128xf32>
    %24 = arith.mulf %19, %23 : vector<2x128xf32>
    %25 = tpu.iota {dimensions = array<i32: 1>} : vector<2x128xi32>
    %c64_i32 = arith.constant 64 : i32
    %26 = vector.broadcast %c64_i32 : i32 to vector<2x128xi32>
    %27 = arith.cmpi slt, %25, %26 : vector<2x128xi32>
    %cst_9 = arith.constant 0.000000e+00 : f32
    %28 = vector.broadcast %cst_9 : f32 to vector<2x128xf32>
    %29 = arith.select %27, %24, %28 : vector<2x128xi1>, vector<2x128xf32>
    %cst_10 = arith.constant 0.000000e+00 : f32
    %30 = vector.broadcast %cst_10 : f32 to vector<2x128xf32>
    %31 = arith.select %27, %22, %30 : vector<2x128xi1>, vector<2x128xf32>
    %32 = vector.shape_cast %0 : vector<1x512xf32> to vector<1x512xf32>
    %33 = vector.broadcast %32 : vector<1x512xf32> to vector<2x512xf32>
    %34 = vector.extract_strided_slice %6 {offsets = [2, 0], sizes = [2, 512], strides = [1, 1]} : vector<16x512xf32> to vector<2x512xf32>
    %35 = arith.truncf %29 : vector<2x128xf32> to vector<2x128xbf16>
    %cst_11 = arith.constant dense<0.000000e+00> : vector<2x512xf32>
    %36 = tpu.matmul %35, %1, %cst_11 {dimension_numbers = #tpu.dot_dimension_numbers<[1], [0], [0], [1], [0, 0, 1, 1], [], []>} : vector<2x128xbf16>, vector<128x512xbf16>, vector<2x512xf32> -> vector<2x512xf32>
    %37 = arith.addf %36, %34 : vector<2x512xf32>
    %38 = vector.extract_strided_slice %37 {offsets = [0, 0], sizes = [2, 384], strides = [1, 1]} : vector<2x512xf32> to vector<2x384xf32>
    %39 = arith.negf %38 : vector<2x384xf32>
    %40 = math.exp %39 : vector<2x384xf32>
    %cst_12 = arith.constant 1.000000e+00 : f32
    %41 = vector.broadcast %cst_12 : f32 to vector<2x384xf32>
    %42 = arith.addf %41, %40 : vector<2x384xf32>
    %43 = arith.divf %41, %42 : vector<2x384xf32>
    %44 = vector.extract_strided_slice %37 {offsets = [0, 384], sizes = [2, 128], strides = [1, 1]} : vector<2x512xf32> to vector<2x128xf32>
    %45 = math.tanh %44 : vector<2x128xf32>
    %46 = vector.extract_strided_slice %43 {offsets = [0, 0], sizes = [2, 128], strides = [1, 1]} : vector<2x384xf32> to vector<2x128xf32>
    %47 = vector.extract_strided_slice %43 {offsets = [0, 128], sizes = [2, 128], strides = [1, 1]} : vector<2x384xf32> to vector<2x128xf32>
    %48 = vector.extract_strided_slice %43 {offsets = [0, 256], sizes = [2, 128], strides = [1, 1]} : vector<2x384xf32> to vector<2x128xf32>
    %49 = arith.mulf %47, %31 : vector<2x128xf32>
    %50 = arith.mulf %46, %45 : vector<2x128xf32>
    %51 = arith.addf %49, %50 : vector<2x128xf32>
    %52 = math.tanh %51 : vector<2x128xf32>
    %53 = arith.mulf %48, %52 : vector<2x128xf32>
    %54 = vector.extract_strided_slice %6 {offsets = [4, 0], sizes = [2, 512], strides = [1, 1]} : vector<16x512xf32> to vector<2x512xf32>
    %55 = arith.truncf %53 : vector<2x128xf32> to vector<2x128xbf16>
    %cst_13 = arith.constant dense<0.000000e+00> : vector<2x512xf32>
    %56 = tpu.matmul %55, %1, %cst_13 {dimension_numbers = #tpu.dot_dimension_numbers<[1], [0], [0], [1], [0, 0, 1, 1], [], []>} : vector<2x128xbf16>, vector<128x512xbf16>, vector<2x512xf32> -> vector<2x512xf32>
    %57 = arith.addf %56, %54 : vector<2x512xf32>
    %58 = vector.extract_strided_slice %57 {offsets = [0, 0], sizes = [2, 384], strides = [1, 1]} : vector<2x512xf32> to vector<2x384xf32>
    %59 = arith.negf %58 : vector<2x384xf32>
    %60 = math.exp %59 : vector<2x384xf32>
    %cst_14 = arith.constant 1.000000e+00 : f32
    %61 = vector.broadcast %cst_14 : f32 to vector<2x384xf32>
    %62 = arith.addf %61, %60 : vector<2x384xf32>
    %63 = arith.divf %61, %62 : vector<2x384xf32>
    %64 = vector.extract_strided_slice %57 {offsets = [0, 384], sizes = [2, 128], strides = [1, 1]} : vector<2x512xf32> to vector<2x128xf32>
    %65 = math.tanh %64 : vector<2x128xf32>
    %66 = vector.extract_strided_slice %63 {offsets = [0, 0], sizes = [2, 128], strides = [1, 1]} : vector<2x384xf32> to vector<2x128xf32>
    %67 = vector.extract_strided_slice %63 {offsets = [0, 128], sizes = [2, 128], strides = [1, 1]} : vector<2x384xf32> to vector<2x128xf32>
    %68 = vector.extract_strided_slice %63 {offsets = [0, 256], sizes = [2, 128], strides = [1, 1]} : vector<2x384xf32> to vector<2x128xf32>
    %69 = arith.mulf %67, %51 : vector<2x128xf32>
    %70 = arith.mulf %66, %65 : vector<2x128xf32>
    %71 = arith.addf %69, %70 : vector<2x128xf32>
    %72 = math.tanh %71 : vector<2x128xf32>
    %73 = arith.mulf %68, %72 : vector<2x128xf32>
    %74 = vector.extract_strided_slice %6 {offsets = [6, 0], sizes = [2, 512], strides = [1, 1]} : vector<16x512xf32> to vector<2x512xf32>
    %75 = arith.truncf %73 : vector<2x128xf32> to vector<2x128xbf16>
    %cst_15 = arith.constant dense<0.000000e+00> : vector<2x512xf32>
    %76 = tpu.matmul %75, %1, %cst_15 {dimension_numbers = #tpu.dot_dimension_numbers<[1], [0], [0], [1], [0, 0, 1, 1], [], []>} : vector<2x128xbf16>, vector<128x512xbf16>, vector<2x512xf32> -> vector<2x512xf32>
    %77 = arith.addf %76, %74 : vector<2x512xf32>
    %78 = vector.extract_strided_slice %77 {offsets = [0, 0], sizes = [2, 384], strides = [1, 1]} : vector<2x512xf32> to vector<2x384xf32>
    %79 = arith.negf %78 : vector<2x384xf32>
    %80 = math.exp %79 : vector<2x384xf32>
    %cst_16 = arith.constant 1.000000e+00 : f32
    %81 = vector.broadcast %cst_16 : f32 to vector<2x384xf32>
    %82 = arith.addf %81, %80 : vector<2x384xf32>
    %83 = arith.divf %81, %82 : vector<2x384xf32>
    %84 = vector.extract_strided_slice %77 {offsets = [0, 384], sizes = [2, 128], strides = [1, 1]} : vector<2x512xf32> to vector<2x128xf32>
    %85 = math.tanh %84 : vector<2x128xf32>
    %86 = vector.extract_strided_slice %83 {offsets = [0, 0], sizes = [2, 128], strides = [1, 1]} : vector<2x384xf32> to vector<2x128xf32>
    %87 = vector.extract_strided_slice %83 {offsets = [0, 128], sizes = [2, 128], strides = [1, 1]} : vector<2x384xf32> to vector<2x128xf32>
    %88 = vector.extract_strided_slice %83 {offsets = [0, 256], sizes = [2, 128], strides = [1, 1]} : vector<2x384xf32> to vector<2x128xf32>
    %89 = arith.mulf %87, %71 : vector<2x128xf32>
    %90 = arith.mulf %86, %85 : vector<2x128xf32>
    %91 = arith.addf %89, %90 : vector<2x128xf32>
    %92 = math.tanh %91 : vector<2x128xf32>
    %93 = arith.mulf %88, %92 : vector<2x128xf32>
    %94 = vector.extract_strided_slice %6 {offsets = [8, 0], sizes = [2, 512], strides = [1, 1]} : vector<16x512xf32> to vector<2x512xf32>
    %95 = arith.truncf %93 : vector<2x128xf32> to vector<2x128xbf16>
    %cst_17 = arith.constant dense<0.000000e+00> : vector<2x512xf32>
    %96 = tpu.matmul %95, %1, %cst_17 {dimension_numbers = #tpu.dot_dimension_numbers<[1], [0], [0], [1], [0, 0, 1, 1], [], []>} : vector<2x128xbf16>, vector<128x512xbf16>, vector<2x512xf32> -> vector<2x512xf32>
    %97 = arith.addf %96, %94 : vector<2x512xf32>
    %98 = vector.extract_strided_slice %97 {offsets = [0, 0], sizes = [2, 384], strides = [1, 1]} : vector<2x512xf32> to vector<2x384xf32>
    %99 = arith.negf %98 : vector<2x384xf32>
    %100 = math.exp %99 : vector<2x384xf32>
    %cst_18 = arith.constant 1.000000e+00 : f32
    %101 = vector.broadcast %cst_18 : f32 to vector<2x384xf32>
    %102 = arith.addf %101, %100 : vector<2x384xf32>
    %103 = arith.divf %101, %102 : vector<2x384xf32>
    %104 = vector.extract_strided_slice %97 {offsets = [0, 384], sizes = [2, 128], strides = [1, 1]} : vector<2x512xf32> to vector<2x128xf32>
    %105 = math.tanh %104 : vector<2x128xf32>
    %106 = vector.extract_strided_slice %103 {offsets = [0, 0], sizes = [2, 128], strides = [1, 1]} : vector<2x384xf32> to vector<2x128xf32>
    %107 = vector.extract_strided_slice %103 {offsets = [0, 128], sizes = [2, 128], strides = [1, 1]} : vector<2x384xf32> to vector<2x128xf32>
    %108 = vector.extract_strided_slice %103 {offsets = [0, 256], sizes = [2, 128], strides = [1, 1]} : vector<2x384xf32> to vector<2x128xf32>
    %109 = arith.mulf %107, %91 : vector<2x128xf32>
    %110 = arith.mulf %106, %105 : vector<2x128xf32>
    %111 = arith.addf %109, %110 : vector<2x128xf32>
    %112 = math.tanh %111 : vector<2x128xf32>
    %113 = arith.mulf %108, %112 : vector<2x128xf32>
    %114 = vector.extract_strided_slice %6 {offsets = [10, 0], sizes = [2, 512], strides = [1, 1]} : vector<16x512xf32> to vector<2x512xf32>
    %115 = arith.truncf %113 : vector<2x128xf32> to vector<2x128xbf16>
    %cst_19 = arith.constant dense<0.000000e+00> : vector<2x512xf32>
    %116 = tpu.matmul %115, %1, %cst_19 {dimension_numbers = #tpu.dot_dimension_numbers<[1], [0], [0], [1], [0, 0, 1, 1], [], []>} : vector<2x128xbf16>, vector<128x512xbf16>, vector<2x512xf32> -> vector<2x512xf32>
    %117 = arith.addf %116, %114 : vector<2x512xf32>
    %118 = vector.extract_strided_slice %117 {offsets = [0, 0], sizes = [2, 384], strides = [1, 1]} : vector<2x512xf32> to vector<2x384xf32>
    %119 = arith.negf %118 : vector<2x384xf32>
    %120 = math.exp %119 : vector<2x384xf32>
    %cst_20 = arith.constant 1.000000e+00 : f32
    %121 = vector.broadcast %cst_20 : f32 to vector<2x384xf32>
    %122 = arith.addf %121, %120 : vector<2x384xf32>
    %123 = arith.divf %121, %122 : vector<2x384xf32>
    %124 = vector.extract_strided_slice %117 {offsets = [0, 384], sizes = [2, 128], strides = [1, 1]} : vector<2x512xf32> to vector<2x128xf32>
    %125 = math.tanh %124 : vector<2x128xf32>
    %126 = vector.extract_strided_slice %123 {offsets = [0, 0], sizes = [2, 128], strides = [1, 1]} : vector<2x384xf32> to vector<2x128xf32>
    %127 = vector.extract_strided_slice %123 {offsets = [0, 128], sizes = [2, 128], strides = [1, 1]} : vector<2x384xf32> to vector<2x128xf32>
    %128 = vector.extract_strided_slice %123 {offsets = [0, 256], sizes = [2, 128], strides = [1, 1]} : vector<2x384xf32> to vector<2x128xf32>
    %129 = arith.mulf %127, %111 : vector<2x128xf32>
    %130 = arith.mulf %126, %125 : vector<2x128xf32>
    %131 = arith.addf %129, %130 : vector<2x128xf32>
    %132 = math.tanh %131 : vector<2x128xf32>
    %133 = arith.mulf %128, %132 : vector<2x128xf32>
    %134 = vector.extract_strided_slice %6 {offsets = [12, 0], sizes = [2, 512], strides = [1, 1]} : vector<16x512xf32> to vector<2x512xf32>
    %135 = arith.truncf %133 : vector<2x128xf32> to vector<2x128xbf16>
    %cst_21 = arith.constant dense<0.000000e+00> : vector<2x512xf32>
    %136 = tpu.matmul %135, %1, %cst_21 {dimension_numbers = #tpu.dot_dimension_numbers<[1], [0], [0], [1], [0, 0, 1, 1], [], []>} : vector<2x128xbf16>, vector<128x512xbf16>, vector<2x512xf32> -> vector<2x512xf32>
    %137 = arith.addf %136, %134 : vector<2x512xf32>
    %138 = vector.extract_strided_slice %137 {offsets = [0, 0], sizes = [2, 384], strides = [1, 1]} : vector<2x512xf32> to vector<2x384xf32>
    %139 = arith.negf %138 : vector<2x384xf32>
    %140 = math.exp %139 : vector<2x384xf32>
    %cst_22 = arith.constant 1.000000e+00 : f32
    %141 = vector.broadcast %cst_22 : f32 to vector<2x384xf32>
    %142 = arith.addf %141, %140 : vector<2x384xf32>
    %143 = arith.divf %141, %142 : vector<2x384xf32>
    %144 = vector.extract_strided_slice %137 {offsets = [0, 384], sizes = [2, 128], strides = [1, 1]} : vector<2x512xf32> to vector<2x128xf32>
    %145 = math.tanh %144 : vector<2x128xf32>
    %146 = vector.extract_strided_slice %143 {offsets = [0, 0], sizes = [2, 128], strides = [1, 1]} : vector<2x384xf32> to vector<2x128xf32>
    %147 = vector.extract_strided_slice %143 {offsets = [0, 128], sizes = [2, 128], strides = [1, 1]} : vector<2x384xf32> to vector<2x128xf32>
    %148 = vector.extract_strided_slice %143 {offsets = [0, 256], sizes = [2, 128], strides = [1, 1]} : vector<2x384xf32> to vector<2x128xf32>
    %149 = arith.mulf %147, %131 : vector<2x128xf32>
    %150 = arith.mulf %146, %145 : vector<2x128xf32>
    %151 = arith.addf %149, %150 : vector<2x128xf32>
    %152 = math.tanh %151 : vector<2x128xf32>
    %153 = arith.mulf %148, %152 : vector<2x128xf32>
    %154 = vector.extract_strided_slice %6 {offsets = [14, 0], sizes = [2, 512], strides = [1, 1]} : vector<16x512xf32> to vector<2x512xf32>
    %155 = arith.truncf %153 : vector<2x128xf32> to vector<2x128xbf16>
    %cst_23 = arith.constant dense<0.000000e+00> : vector<2x512xf32>
    %156 = tpu.matmul %155, %1, %cst_23 {dimension_numbers = #tpu.dot_dimension_numbers<[1], [0], [0], [1], [0, 0, 1, 1], [], []>} : vector<2x128xbf16>, vector<128x512xbf16>, vector<2x512xf32> -> vector<2x512xf32>
    %157 = arith.addf %156, %154 : vector<2x512xf32>
    %158 = vector.extract_strided_slice %157 {offsets = [0, 0], sizes = [2, 384], strides = [1, 1]} : vector<2x512xf32> to vector<2x384xf32>
    %159 = arith.negf %158 : vector<2x384xf32>
    %160 = math.exp %159 : vector<2x384xf32>
    %cst_24 = arith.constant 1.000000e+00 : f32
    %161 = vector.broadcast %cst_24 : f32 to vector<2x384xf32>
    %162 = arith.addf %161, %160 : vector<2x384xf32>
    %163 = arith.divf %161, %162 : vector<2x384xf32>
    %164 = vector.extract_strided_slice %157 {offsets = [0, 384], sizes = [2, 128], strides = [1, 1]} : vector<2x512xf32> to vector<2x128xf32>
    %165 = math.tanh %164 : vector<2x128xf32>
    %166 = vector.extract_strided_slice %163 {offsets = [0, 0], sizes = [2, 128], strides = [1, 1]} : vector<2x384xf32> to vector<2x128xf32>
    %167 = vector.extract_strided_slice %163 {offsets = [0, 128], sizes = [2, 128], strides = [1, 1]} : vector<2x384xf32> to vector<2x128xf32>
    %168 = vector.extract_strided_slice %163 {offsets = [0, 256], sizes = [2, 128], strides = [1, 1]} : vector<2x384xf32> to vector<2x128xf32>
    %169 = arith.mulf %167, %151 : vector<2x128xf32>
    %170 = arith.mulf %166, %165 : vector<2x128xf32>
    %171 = arith.addf %169, %170 : vector<2x128xf32>
    %172 = math.tanh %171 : vector<2x128xf32>
    %173 = arith.mulf %168, %172 : vector<2x128xf32>
    %174 = arith.truncf %173 : vector<2x128xf32> to vector<2x128xbf16>
    %cst_25 = arith.constant dense<0.000000e+00> : vector<2x512xf32>
    %175 = tpu.matmul %174, %1, %cst_25 {dimension_numbers = #tpu.dot_dimension_numbers<[1], [0], [0], [1], [0, 0, 1, 1], [], []>} : vector<2x128xbf16>, vector<128x512xbf16>, vector<2x512xf32> -> vector<2x512xf32>
    %176 = arith.addf %175, %33 : vector<2x512xf32>
    %177 = vector.extract_strided_slice %176 {offsets = [0, 0], sizes = [2, 384], strides = [1, 1]} : vector<2x512xf32> to vector<2x384xf32>
    %178 = arith.negf %177 : vector<2x384xf32>
    %179 = math.exp %178 : vector<2x384xf32>
    %cst_26 = arith.constant 1.000000e+00 : f32
    %180 = vector.broadcast %cst_26 : f32 to vector<2x384xf32>
    %181 = arith.addf %180, %179 : vector<2x384xf32>
    %182 = arith.divf %180, %181 : vector<2x384xf32>
    %183 = vector.extract_strided_slice %176 {offsets = [0, 384], sizes = [2, 128], strides = [1, 1]} : vector<2x512xf32> to vector<2x128xf32>
    %184 = math.tanh %183 : vector<2x128xf32>
    %185 = vector.extract_strided_slice %182 {offsets = [0, 0], sizes = [2, 128], strides = [1, 1]} : vector<2x384xf32> to vector<2x128xf32>
    %186 = vector.extract_strided_slice %182 {offsets = [0, 128], sizes = [2, 128], strides = [1, 1]} : vector<2x384xf32> to vector<2x128xf32>
    %187 = vector.extract_strided_slice %182 {offsets = [0, 256], sizes = [2, 128], strides = [1, 1]} : vector<2x384xf32> to vector<2x128xf32>
    %188 = arith.mulf %186, %171 : vector<2x128xf32>
    %189 = arith.mulf %185, %184 : vector<2x128xf32>
    %190 = arith.addf %188, %189 : vector<2x128xf32>
    %191 = math.tanh %190 : vector<2x128xf32>
    %192 = arith.mulf %187, %191 : vector<2x128xf32>
    %c0_27 = arith.constant 0 : index
    %c0_28 = arith.constant 0 : index
    %193 = vector.load %arg5[%c0_27, %c0_28] : memref<128x128xf32, #tpu.memory_space<vmem>>, vector<128x128xf32>
    %cst_29 = arith.constant dense<0.000000e+00> : vector<2x128xf32>
    %194 = tpu.matmul %192, %193, %cst_29 {dimension_numbers = #tpu.dot_dimension_numbers<[1], [0], [0], [1], [0, 0, 1, 1], [], []>} : vector<2x128xf32>, vector<128x128xf32>, vector<2x128xf32> -> vector<2x128xf32>
    %c0_30 = arith.constant 0 : index
    %c0_31 = arith.constant 0 : index
    %195 = vector.load %arg6[%c0_30, %c0_31] : memref<1x128xf32, #tpu.memory_space<vmem>>, vector<1x128xf32>
    %196 = vector.broadcast %195 : vector<1x128xf32> to vector<2x128xf32>
    %197 = arith.addf %194, %196 : vector<2x128xf32>
    %c0_32 = arith.constant 0 : index
    %c0_33 = arith.constant 0 : index
    %198 = vector.load %arg7[%c0_32, %c0_33] : memref<2x128xf32, #tpu.memory_space<vmem>>, vector<2x128xf32>
    tpu.vector_store %arg7[%c0_32, %c0_33], %197 {strides = array<i32>} : memref<2x128xf32, #tpu.memory_space<vmem>>, vector<2x128xf32>,
    return
  }
  func.func @transform_0(%arg0: i32) -> (i32, i32) {
    %c0_i32 = arith.constant 0 : i32
    %c0_i32_0 = arith.constant 0 : i32
    %c0_i32_1 = arith.constant 0 : i32
    return %c0_i32, %c0_i32_0 : i32, i32
  }
  func.func @transform_1(%arg0: i32) -> (i32, i32) {
    %c0_i32 = arith.constant 0 : i32
    %c0_i32_0 = arith.constant 0 : i32
    %c0_i32_1 = arith.constant 0 : i32
    return %c0_i32, %c0_i32_0 : i32, i32
  }
  func.func @transform_2(%arg0: i32) -> (i32, i32) {
    %c0_i32 = arith.constant 0 : i32
    %c0_i32_0 = arith.constant 0 : i32
    %c0_i32_1 = arith.constant 0 : i32
    return %c0_i32, %c0_i32_0 : i32, i32
  }
  func.func @transform_3(%arg0: i32) -> (i32, i32) {
    %c0_i32 = arith.constant 0 : i32
    %c0_i32_0 = arith.constant 0 : i32
    %c0_i32_1 = arith.constant 0 : i32
    return %c0_i32, %c0_i32_0 : i32, i32
  }
  func.func @transform_4(%arg0: i32) -> (i32, i32) {
    %c0_i32 = arith.constant 0 : i32
    %c0_i32_0 = arith.constant 0 : i32
    %c0_i32_1 = arith.constant 0 : i32
    return %c0_i32, %c0_i32_0 : i32, i32
  }
  func.func @transform_5(%arg0: i32) -> (i32, i32) {
    %c0_i32 = arith.constant 0 : i32
    %c0_i32_0 = arith.constant 0 : i32
    %c0_i32_1 = arith.constant 0 : i32
    return %c0_i32, %c0_i32_0 : i32, i32
  }
  func.func @transform_6(%arg0: i32) -> (i32, i32) {
    %c0_i32 = arith.constant 0 : i32
    %c0_i32_0 = arith.constant 0 : i32
    %c0_i32_1 = arith.constant 0 : i32
    return %c0_i32, %c0_i32_0 : i32, i32
  }
}

</mosaic_0001>

<llo_original>
// kernel: tpu_custom_call.1
$region0: #{tpu_custom_call.1}
  #allocation0 [shape = 'u32[]', space=smem, size = 0x4, offset = 0x4, fixed_abs, tag = 'smem constant byte address 0x4 - core index']
  #allocation1 [shape = 'u32[144,128]{1,0:T(1,128)}', space=vmem, size = 0x12000, scoped, tag = 'internal scratch']
  %s0 = inlined_call_operand.vmem [shape: f32[16,8], index: 0, kind: input, shape index: {}]
  %s1 = inlined_call_operand.hbm [shape: f32[8,512], index: 1, kind: input, shape index: {}]
  %s2 = inlined_call_operand.vmem [shape: f32[1,512], index: 2, kind: input, shape index: {}]
  %s3 = inlined_call_operand.hbm [shape: bf16[128,512], index: 3, kind: input, shape index: {}]
  %s4 = inlined_call_operand.hbm [shape: f32[128,128], index: 4, kind: input, shape index: {}]
  %s5 = inlined_call_operand.vmem [shape: f32[1,128], index: 5, kind: input, shape index: {}]
  %s6 = inlined_call_operand.hbm [shape: f32[2,128], index: 6, kind: output, shape index: {}]
  %s7 = sld [smem:[#allocation0]]
  $region46: #{tpu_custom_call.1} parent=0
    _
  %s9 = ssub.s32 1, %s7
  %s10 = scalar_select 0, %s9, %s7
  $region1: #{tpu_custom_call.1} parent=0
    #allocation2 [shape = 'u8[16384]{0}', space=vmem, size = 0x4000, scoped, tag = 'input window, operand 1, single buffered']
    #allocation3 [shape = 's32[1]{0}', space=sflag, size = 0x4, scoped, tag = 'scoped memory for tpu_custom_call.1']
    #allocation4 [shape = 's32[1]{0}', space=sflag, size = 0x4, scoped, tag = 'scoped memory for tpu_custom_call.1']
    #allocation5 [shape = 'u8[131072]{0}', space=vmem, size = 0x20000, scoped, tag = 'input window, operand 3, single buffered']
    #allocation6 [shape = 's32[1]{0}', space=sflag, size = 0x4, scoped, tag = 'scoped memory for tpu_custom_call.1']
    #allocation7 [shape = 'u8[65536]{0}', space=vmem, size = 0x10000, scoped, tag = 'input window, operand 4, single buffered']
    #allocation8 [shape = 'u8[1024]{0}', space=vmem, size = 0x400, scoped, tag = 'output window, operand 0, single buffered']
    %11 = vsyncpa [#allocation3], 0
    %12 = vsyncpa [#allocation6], 0
    %13 = vsyncpa [#allocation4], 0
    // Predicated region
    $region2: #{tpu_custom_call.1} parent=1 // pred_check
      _
    $region3: #{tpu_custom_call.1} parent=1 // pred_check_branch
      %15 = sbr.rel (0) target = $region5
    $region4: #{tpu_custom_call.1} parent=1 // pred_region
      _
    $region5: #{tpu_custom_call.1} parent=1 // pred_fallthru
      _
    // Predicated region
    $region6: #{tpu_custom_call.1} parent=1 // pred_check
      _
    $region7: #{tpu_custom_call.1} parent=1 // pred_check_branch
      %17 = sbr.rel (0) target = $region9
    $region8: #{tpu_custom_call.1} parent=1 // pred_region
      %s19 = ssub.s32 512, 512
      %20 = vsyncadd [#allocation3], %s19
      %s22 = sshll.u32 [#allocation2], 4
      %s23 = int_to_ptr.vmem [resolvable:$true] %s22
      %25 = dma.hbm_to_vmem [thread:$0]  %s1, 512, %s23, [#allocation3]
    $region9: #{tpu_custom_call.1} parent=1 // pred_fallthru
      _
    // Predicated region
    $region10: #{tpu_custom_call.1} parent=1 // pred_check
      _
    $region11: #{tpu_custom_call.1} parent=1 // pred_check_branch
      %27 = sbr.rel (0) target = $region13
    $region12: #{tpu_custom_call.1} parent=1 // pred_region
      _
    $region13: #{tpu_custom_call.1} parent=1 // pred_fallthru
      _
    // Predicated region
    $region14: #{tpu_custom_call.1} parent=1 // pred_check
      _
    $region15: #{tpu_custom_call.1} parent=1 // pred_check_branch
      %29 = sbr.rel (0) target = $region17
    $region16: #{tpu_custom_call.1} parent=1 // pred_region
      %s31 = ssub.s32 4096, 4096
      %32 = vsyncadd [#allocation6], %s31
      %s33 = sshll.u32 [#allocation5], 4
      %s34 = int_to_ptr.vmem [resolvable:$true] %s33
      %39 = dma.hbm_to_vmem [thread:$0]  %s3, 4096, %s34, [#allocation6], 256, 256, 16
    $region17: #{tpu_custom_call.1} parent=1 // pred_fallthru
      _
    // Predicated region
    $region18: #{tpu_custom_call.1} parent=1 // pred_check
      _
    $region19: #{tpu_custom_call.1} parent=1 // pred_check_branch
      %41 = sbr.rel (0) target = $region21
    $region20: #{tpu_custom_call.1} parent=1 // pred_region
      %s43 = ssub.s32 2048, 2048
      %44 = vsyncadd [#allocation6], %s43
      %s45 = sshll.u32 [#allocation7], 4
      %s46 = int_to_ptr.vmem [resolvable:$true] %s45
      %51 = dma.hbm_to_vmem [thread:$0]  %s4, 2048, %s46, [#allocation6], 128, 128, 8
    $region21: #{tpu_custom_call.1} parent=1 // pred_fallthru
      _
    // Predicated region
    $region22: #{tpu_custom_call.1} parent=1 // pred_check
      _
    $region23: #{tpu_custom_call.1} parent=1 // pred_check_branch
      %53 = sbr.rel (0) target = $region25
    $region24: #{tpu_custom_call.1} parent=1 // pred_region
      _
    $region25: #{tpu_custom_call.1} parent=1 // pred_fallthru
      _
    // Predicated region
    $region26: #{tpu_custom_call.1} parent=1 // pred_check
      _
    $region27: #{tpu_custom_call.1} parent=1 // pred_check_branch
      %55 = sbr.rel (0) target = $region29
    $region28: #{tpu_custom_call.1} parent=1 // pred_region
      %56 = dma.done [#allocation3], 512
    $region29: #{tpu_custom_call.1} parent=1 // pred_fallthru
      _
    // Predicated region
    $region30: #{tpu_custom_call.1} parent=1 // pred_check
      _
    $region31: #{tpu_custom_call.1} parent=1 // pred_check_branch
      %58 = sbr.rel (0) target = $region33
    $region32: #{tpu_custom_call.1} parent=1 // pred_region
      %59 = dma.done [#allocation6], 4096
    $region33: #{tpu_custom_call.1} parent=1 // pred_fallthru
      _
    // Predicated region
    $region34: #{tpu_custom_call.1} parent=1 // pred_check
      _
    $region35: #{tpu_custom_call.1} parent=1 // pred_check_branch
      %61 = sbr.rel (0) target = $region37
    $region36: #{tpu_custom_call.1} parent=1 // pred_region
      %62 = dma.done [#allocation6], 2048
    $region37: #{tpu_custom_call.1} parent=1 // pred_fallthru
      _
    %v64 = vld [vmem:[%s2] sm:$0xf]
    %v65 = vld [vmem:[#allocation5] sm:$0xff]
    %v66 = vld [vmem:[#allocation5 + $0x8] sm:$0xff]
    %v67 = vld [vmem:[#allocation5 + $0x10] sm:$0xff]
    %v68 = vld [vmem:[#allocation5 + $0x18] sm:$0xff]
    %v69 = vld [vmem:[#allocation5 + $0x20] sm:$0xff]
    %v70 = vld [vmem:[#allocation5 + $0x28] sm:$0xff]
    %v71 = vld [vmem:[#allocation5 + $0x30] sm:$0xff]
    %v72 = vld [vmem:[#allocation5 + $0x38] sm:$0xff]
    %v73 = vld [vmem:[#allocation5 + $0x40] sm:$0xff]
    %v74 = vld [vmem:[#allocation5 + $0x48] sm:$0xff]
    %v75 = vld [vmem:[#allocation5 + $0x50] sm:$0xff]
    %v76 = vld [vmem:[#allocation5 + $0x58] sm:$0xff]
    %v77 = vld [vmem:[#allocation5 + $0x60] sm:$0xff]
    %v78 = vld [vmem:[#allocation5 + $0x68] sm:$0xff]
    %v79 = vld [vmem:[#allocation5 + $0x70] sm:$0xff]
    %v80 = vld [vmem:[#allocation5 + $0x78] sm:$0xff]
    %v81 = vld [vmem:[#allocation5 + $0x80] sm:$0xff]
    %v82 = vld [vmem:[#allocation5 + $0x88] sm:$0xff]
    %v83 = vld [vmem:[#allocation5 + $0x90] sm:$0xff]
    %v84 = vld [vmem:[#allocation5 + $0x98] sm:$0xff]
    %v85 = vld [vmem:[#allocation5 + $0xa0] sm:$0xff]
    %v86 = vld [vmem:[#allocation5 + $0xa8] sm:$0xff]
    %v87 = vld [vmem:[#allocation5 + $0xb0] sm:$0xff]
    %v88 = vld [vmem:[#allocation5 + $0xb8] sm:$0xff]
    %v89 = vld [vmem:[#allocation5 + $0xc0] sm:$0xff]
    %v90 = vld [vmem:[#allocation5 + $0xc8] sm:$0xff]
    %v91 = vld [vmem:[#allocation5 + $0xd0] sm:$0xff]
    %v92 = vld [vmem:[#allocation5 + $0xd8] sm:$0xff]
    %v93 = vld [vmem:[#allocation5 + $0xe0] sm:$0xff]
    %v94 = vld [vmem:[#allocation5 + $0xe8] sm:$0xff]
    %v95 = vld [vmem:[#allocation5 + $0xf0] sm:$0xff]
    %v96 = vld [vmem:[#allocation5 + $0xf8] sm:$0xff]
    %v97 = vld [vmem:[%s0] sm:$0xff]
    %v98 = vld [vmem:[%s0 + $0x8] sm:$0xff]
    %v99 = vld [vmem:[#allocation2] sm:$0xff]
    %v100 = vld [vmem:[#allocation2 + $0x8] sm:$0xff]
    %v101 = vld [vmem:[#allocation2 + $0x10] sm:$0xff]
    %v102 = vld [vmem:[#allocation2 + $0x18] sm:$0xff]
    %v104 = vlaneseq
    %v105 = vshrl.u32 %v104, 7
    %v106 = vsub.s32 0, %v105
    %v107 = vrot.slane %v64, %v106
    %v108 = vlaneseq
    %v109 = vshrl.u32 %v108, 7
    %v110 = vsub.s32 1, %v109
    %v111 = vrot.slane %v64, %v110
    %v112 = vlaneseq
    %v113 = vshrl.u32 %v112, 7
    %v114 = vsub.s32 2, %v113
    %v115 = vrot.slane %v64, %v114
    %v116 = vlaneseq
    %v117 = vshrl.u32 %v116, 7
    %v118 = vsub.s32 3, %v117
    %v119 = vrot.slane %v64, %v118
    %vm124 = vcmask 64512
    %v126 = vsel %vm124, %v97, 0
    %v129 = vsel %vm124, %v98, 0
    %131 = vmatprep.subr.mxu0 0.0
    %132 = vmatpush1.msra.mxu0 0.0
    %133 = vmatprep.subr.mxu0 0.0
    %134 = vmatpush1.msra.mxu0 0.0
    %135 = vmatprep.subr.mxu0 0.0
    %136 = vmatpush1.msra.mxu0 0.0
    %137 = vmatprep.subr.mxu0 0.0
    %138 = vmatpush1.msra.mxu0 0.0
    %139 = vmatprep.subr.mxu0 0.0
    %140 = vmatpush1.msra.mxu0 0.0
    %141 = vmatprep.subr.mxu0 0.0
    %142 = vmatpush1.msra.mxu0 0.0
    %143 = vmatprep.subr.mxu0 0.0
    %144 = vmatpush1.msra.mxu0 0.0
    %145 = vmatprep.subr.mxu0 0.0
    %146 = vmatpush1.msra.mxu0 0.0
    %147 = vmatprep.subr.mxu0 0.0
    %148 = vmatpush1.msra.mxu0 0.0
    %149 = vmatprep.subr.mxu0 0.0
    %150 = vmatpush1.msra.mxu0 0.0
    %151 = vmatprep.subr.mxu0 0.0
    %152 = vmatpush1.msra.mxu0 0.0
    %153 = vmatprep.subr.mxu0 0.0
    %154 = vmatpush1.msra.mxu0 0.0
    %155 = vmatprep.subr.mxu0 0.0
    %156 = vmatpush1.msra.mxu0 0.0
    %157 = vmatprep.subr.mxu0 0.0
    %158 = vmatpush1.msra.mxu0 0.0
    %159 = vmatprep.subr.mxu0 0.0
    %160 = vmatpush1.msra.mxu0 0.0
    %161 = vmatprep.subr.mxu0 %v100
    %162 = vmatpush1.msra.mxu0 %v99
    %163 = vmatprep.subr.mxu0 0.0
    %164 = vmatpush2.msra.mxu0 0.0
    %165 = vmatprep.subr.mxu0 0.0
    %166 = vmatpush2.msra.mxu0 0.0
    %167 = vmatprep.subr.mxu0 0.0
    %168 = vmatpush2.msra.mxu0 0.0
    %169 = vmatprep.subr.mxu0 0.0
    %170 = vmatpush2.msra.mxu0 0.0
    %171 = vmatprep.subr.mxu0 0.0
    %172 = vmatpush2.msra.mxu0 0.0
    %173 = vmatprep.subr.mxu0 0.0
    %174 = vmatpush2.msra.mxu0 0.0
    %175 = vmatprep.subr.mxu0 0.0
    %176 = vmatpush2.msra.mxu0 0.0
    %177 = vmatprep.subr.mxu0 0.0
    %178 = vmatpush2.msra.mxu0 0.0
    %179 = vmatprep.subr.mxu0 0.0
    %180 = vmatpush2.msra.mxu0 0.0
    %181 = vmatprep.subr.mxu0 0.0
    %182 = vmatpush2.msra.mxu0 0.0
    %183 = vmatprep.subr.mxu0 0.0
    %184 = vmatpush2.msra.mxu0 0.0
    %185 = vmatprep.subr.mxu0 0.0
    %186 = vmatpush2.msra.mxu0 0.0
    %187 = vmatprep.subr.mxu0 0.0
    %188 = vmatpush2.msra.mxu0 0.0
    %189 = vmatprep.subr.mxu0 0.0
    %190 = vmatpush2.msra.mxu0 0.0
    %191 = vmatprep.subr.mxu0 0.0
    %192 = vmatpush2.msra.mxu0 0.0
    %193 = vmatprep.subr.mxu0 0.0
    %194 = vmatpush2.msra.mxu0 0.0
    %195 = vmatprep.mubr.f32.mxu0 0.0
    %196 = vmatmul.mubr.f32.gmra.mxu0 %v126
    %v197 = vpop.f32.mrf.mxu0
    %v198 = vadd.f32 %v107, %v197
    %v199 = vpop.f32.mrf.mxu0
    %v200 = vadd.f32 %v111, %v199
    %201 = vmatprep.mubr.f32.mxu0 0.0
    %202 = vmatmul.mubr.f32.gmra.mxu0 %v129
    %v203 = vpop.f32.mrf.mxu0
    %v204 = vadd.f32 %v107, %v203
    %v205 = vpop.f32.mrf.mxu0
    %v206 = vadd.f32 %v111, %v205
    %207 = vdwg.mxu0
    %208 = vmatprep.subr.mxu0 0.0
    %209 = vmatpush1.msra.mxu0 0.0
    %210 = vmatprep.subr.mxu0 0.0
    %211 = vmatpush1.msra.mxu0 0.0
    %212 = vmatprep.subr.mxu0 0.0
    %213 = vmatpush1.msra.mxu0 0.0
    %214 = vmatprep.subr.mxu0 0.0
    %215 = vmatpush1.msra.mxu0 0.0
    %216 = vmatprep.subr.mxu0 0.0
    %217 = vmatpush1.msra.mxu0 0.0
    %218 = vmatprep.subr.mxu0 0.0
    %219 = vmatpush1.msra.mxu0 0.0
    %220 = vmatprep.subr.mxu0 0.0
    %221 = vmatpush1.msra.mxu0 0.0
    %222 = vmatprep.subr.mxu0 0.0
    %223 = vmatpush1.msra.mxu0 0.0
    %224 = vmatprep.subr.mxu0 0.0
    %225 = vmatpush1.msra.mxu0 0.0
    %226 = vmatprep.subr.mxu0 0.0
    %227 = vmatpush1.msra.mxu0 0.0
    %228 = vmatprep.subr.mxu0 0.0
    %229 = vmatpush1.msra.mxu0 0.0
    %230 = vmatprep.subr.mxu0 0.0
    %231 = vmatpush1.msra.mxu0 0.0
    %232 = vmatprep.subr.mxu0 0.0
    %233 = vmatpush1.msra.mxu0 0.0
    %234 = vmatprep.subr.mxu0 0.0
    %235 = vmatpush1.msra.mxu0 0.0
    %236 = vmatprep.subr.mxu0 0.0
    %237 = vmatpush1.msra.mxu0 0.0
    %238 = vmatprep.subr.mxu0 %v102
    %239 = vmatpush1.msra.mxu0 %v101
    %240 = vmatprep.subr.mxu0 0.0
    %241 = vmatpush2.msra.mxu0 0.0
    %242 = vmatprep.subr.mxu0 0.0
    %243 = vmatpush2.msra.mxu0 0.0
    %244 = vmatprep.subr.mxu0 0.0
    %245 = vmatpush2.msra.mxu0 0.0
    %246 = vmatprep.subr.mxu0 0.0
    %247 = vmatpush2.msra.mxu0 0.0
    %248 = vmatprep.subr.mxu0 0.0
    %249 = vmatpush2.msra.mxu0 0.0
    %250 = vmatprep.subr.mxu0 0.0
    %251 = vmatpush2.msra.mxu0 0.0
    %252 = vmatprep.subr.mxu0 0.0
    %253 = vmatpush2.msra.mxu0 0.0
    %254 = vmatprep.subr.mxu0 0.0
    %255 = vmatpush2.msra.mxu0 0.0
    %256 = vmatprep.subr.mxu0 0.0
    %257 = vmatpush2.msra.mxu0 0.0
    %258 = vmatprep.subr.mxu0 0.0
    %259 = vmatpush2.msra.mxu0 0.0
    %260 = vmatprep.subr.mxu0 0.0
    %261 = vmatpush2.msra.mxu0 0.0
    %262 = vmatprep.subr.mxu0 0.0
    %263 = vmatpush2.msra.mxu0 0.0
    %264 = vmatprep.subr.mxu0 0.0
    %265 = vmatpush2.msra.mxu0 0.0
    %266 = vmatprep.subr.mxu0 0.0
    %267 = vmatpush2.msra.mxu0 0.0
    %268 = vmatprep.subr.mxu0 0.0
    %269 = vmatpush2.msra.mxu0 0.0
    %270 = vmatprep.subr.mxu0 0.0
    %271 = vmatpush2.msra.mxu0 0.0
    %272 = vmatprep.mubr.f32.mxu0 0.0
    %273 = vmatmul.mubr.f32.gmra.mxu0 %v126
    %v274 = vpop.f32.mrf.mxu0
    %v275 = vadd.f32 %v115, %v274
    %v276 = vpop.f32.mrf.mxu0
    %v277 = vadd.f32 %v119, %v276
    %278 = vmatprep.mubr.f32.mxu0 0.0
    %279 = vmatmul.mubr.f32.gmra.mxu0 %v129
    %v280 = vpop.f32.mrf.mxu0
    %v281 = vadd.f32 %v115, %v280
    %v282 = vpop.f32.mrf.mxu0
    %v283 = vadd.f32 %v119, %v282
    %284 = vdwg.mxu0
    %v285 = vxor.u32 %v198, 2147483648
    %v286 = vxor.u32 %v200, 2147483648
    %v287 = vxor.u32 %v275, 2147483648
    %v288 = vmul.f32 %v285, 1.442695
    %v289 = vpow.pop %v288
    %v290 = vmul.f32 %v286, 1.442695
    %v291 = vpow.pop %v290
    %v292 = vmul.f32 %v287, 1.442695
    %v293 = vpow.pop %v292
    %v294 = vadd.f32 %v289, 1.0
    %v295 = vadd.f32 %v291, 1.0
    %v296 = vadd.f32 %v293, 1.0
    %v297 = vrcp.pop %v294
    %v298 = vmul.f32 1.0, %v297
    %v299 = vrcp.pop %v295
    %v300 = vmul.f32 1.0, %v299
    %v301 = vrcp.pop %v296
    %v302 = vmul.f32 1.0, %v301
    %v303 = vtanh.pop %v277
    %v304 = vmul.f32 %v300, 0.0
    %v305 = vmul.f32 %v298, %v303
    %v306 = vadd.f32 %v304, %v305
    %v307 = vtanh.pop %v306
    %v308 = vmul.f32 %v302, %v307
    %v309 = vlaneseq
    %v310 = vand.u32 %v309, 127
    %vm311 = vcmp.lt.s32.totalorder %v310, 64
    %v312 = vsel %vm311, %v308, 0.0
    %v313 = vsel %vm311, %v306, 0.0
    %v314 = vpack.c.bf16 %v312, %v312
    %v347 = vunpack.c.l.b16 %v65
    %v348 = vunpack.c.h.b16 %v65
    %v349 = vunpack.c.l.b16 %v66
    %v350 = vunpack.c.h.b16 %v66
    %v351 = vunpack.c.l.b16 %v67
    %v352 = vunpack.c.h.b16 %v67
    %v353 = vunpack.c.l.b16 %v68
    %v354 = vunpack.c.h.b16 %v68
    %v355 = vunpack.c.l.b16 %v69
    %v356 = vunpack.c.h.b16 %v69
    %v357 = vunpack.c.l.b16 %v70
    %v358 = vunpack.c.h.b16 %v70
    %v359 = vunpack.c.l.b16 %v71
    %v360 = vunpack.c.h.b16 %v71
    %v361 = vunpack.c.l.b16 %v72
    %v362 = vunpack.c.h.b16 %v72
    %v363 = vunpack.c.l.b16 %v73
    %v364 = vunpack.c.h.b16 %v73
    %v365 = vunpack.c.l.b16 %v74
    %v366 = vunpack.c.h.b16 %v74
    %v367 = vunpack.c.l.b16 %v75
    %v368 = vunpack.c.h.b16 %v75
    %v369 = vunpack.c.l.b16 %v76
    %v370 = vunpack.c.h.b16 %v76
    %v371 = vunpack.c.l.b16 %v77
    %v372 = vunpack.c.h.b16 %v77
    %v373 = vunpack.c.l.b16 %v78
    %v374 = vunpack.c.h.b16 %v78
    %v375 = vunpack.c.l.b16 %v79
    %v376 = vunpack.c.h.b16 %v79
    %v377 = vunpack.c.l.b16 %v80
    %v378 = vunpack.c.h.b16 %v80
    %v379 = vunpack.c.l.b16 %v81
    %v380 = vunpack.c.h.b16 %v81
    %v381 = vunpack.c.l.b16 %v82
    %v382 = vunpack.c.h.b16 %v82
    %v383 = vunpack.c.l.b16 %v83
    %v384 = vunpack.c.h.b16 %v83
    %v385 = vunpack.c.l.b16 %v84
    %v386 = vunpack.c.h.b16 %v84
    %v387 = vunpack.c.l.b16 %v85
    %v388 = vunpack.c.h.b16 %v85
    %v389 = vunpack.c.l.b16 %v86
    %v390 = vunpack.c.h.b16 %v86
    %v391 = vunpack.c.l.b16 %v87
    %v392 = vunpack.c.h.b16 %v87
    %v393 = vunpack.c.l.b16 %v88
    %v394 = vunpack.c.h.b16 %v88
    %v395 = vunpack.c.l.b16 %v89
    %v396 = vunpack.c.h.b16 %v89
    %v397 = vunpack.c.l.b16 %v90
    %v398 = vunpack.c.h.b16 %v90
    %v399 = vunpack.c.l.b16 %v91
    %v400 = vunpack.c.h.b16 %v91
    %v401 = vunpack.c.l.b16 %v92
    %v402 = vunpack.c.h.b16 %v92
    %v403 = vunpack.c.l.b16 %v93
    %v404 = vunpack.c.h.b16 %v93
    %v405 = vunpack.c.l.b16 %v94
    %v406 = vunpack.c.h.b16 %v94
    %v407 = vunpack.c.l.b16 %v95
    %v408 = vunpack.c.h.b16 %v95
    %v409 = vunpack.c.l.b16 %v96
    %v410 = vunpack.c.h.b16 %v96
    %v411 = vpack.c.b16 %v351, %v347
    %v412 = vpack.c.b16 %v352, %v348
    %v413 = vpack.c.b16 %v353, %v349
    %v414 = vpack.c.b16 %v354, %v350
    %v415 = vpack.c.b16 %v359, %v355
    %v416 = vpack.c.b16 %v360, %v356
    %v417 = vpack.c.b16 %v361, %v357
    %v418 = vpack.c.b16 %v362, %v358
    %v419 = vpack.c.b16 %v367, %v363
    %v420 = vpack.c.b16 %v368, %v364
    %v421 = vpack.c.b16 %v369, %v365
    %v422 = vpack.c.b16 %v370, %v366
    %v423 = vpack.c.b16 %v375, %v371
    %v424 = vpack.c.b16 %v376, %v372
    %v425 = vpack.c.b16 %v377, %v373
    %v426 = vpack.c.b16 %v378, %v374
    %v427 = vpack.c.b16 %v383, %v379
    %v428 = vpack.c.b16 %v384, %v380
    %v429 = vpack.c.b16 %v385, %v381
    %v430 = vpack.c.b16 %v386, %v382
    %v431 = vpack.c.b16 %v391, %v387
    %v432 = vpack.c.b16 %v392, %v388
    %v433 = vpack.c.b16 %v393, %v389
    %v434 = vpack.c.b16 %v394, %v390
    %v435 = vpack.c.b16 %v399, %v395
    %v436 = vpack.c.b16 %v400, %v396
    %v437 = vpack.c.b16 %v401, %v397
    %v438 = vpack.c.b16 %v402, %v398
    %v439 = vpack.c.b16 %v407, %v403
    %v440 = vpack.c.b16 %v408, %v404
    %v441 = vpack.c.b16 %v409, %v405
    %v442 = vpack.c.b16 %v410, %v406
    %v479 = vrot.slane %v198, 2
    %v480 = vrot.slane %v200, 2
    %v481 = vrot.slane %v275, 2
    %v482 = vrot.slane %v277, 2
    %487 = vmatprep.subr.bf16.mxu0 %v440
    %488 = vmatpush1.bf16.msra.mxu0 %v439
    %489 = vmatprep.subr.bf16.mxu0 %v436
    %490 = vmatpush1.bf16.msra.mxu0 %v435
    %491 = vmatprep.subr.bf16.mxu0 %v432
    %492 = vmatpush1.bf16.msra.mxu0 %v431
    %493 = vmatprep.subr.bf16.mxu0 %v428
    %494 = vmatpush1.bf16.msra.mxu0 %v427
    %495 = vmatprep.subr.bf16.mxu0 %v424
    %496 = vmatpush1.bf16.msra.mxu0 %v423
    %497 = vmatprep.subr.bf16.mxu0 %v420
    %498 = vmatpush1.bf16.msra.mxu0 %v419
    %499 = vmatprep.subr.bf16.mxu0 %v416
    %500 = vmatpush1.bf16.msra.mxu0 %v415
    %501 = vmatprep.subr.bf16.mxu0 %v412
    %502 = vmatpush1.bf16.msra.mxu0 %v411
    %503 = vmatprep.subr.bf16.mxu0 0
    %504 = vmatpush2.bf16.msra.mxu0 0
    %505 = vmatprep.subr.bf16.mxu0 0
    %506 = vmatpush2.bf16.msra.mxu0 0
    %507 = vmatprep.subr.bf16.mxu0 0
    %508 = vmatpush2.bf16.msra.mxu0 0
    %509 = vmatprep.subr.bf16.mxu0 0
    %510 = vmatpush2.bf16.msra.mxu0 0
    %511 = vmatprep.subr.bf16.mxu0 0
    %512 = vmatpush2.bf16.msra.mxu0 0
    %513 = vmatprep.subr.bf16.mxu0 0
    %514 = vmatpush2.bf16.msra.mxu0 0
    %515 = vmatprep.subr.bf16.mxu0 0
    %516 = vmatpush2.bf16.msra.mxu0 0
    %517 = vmatprep.subr.bf16.mxu0 0
    %518 = vmatpush2.bf16.msra.mxu0 0
    %519 = vmatprep.mubr.bf16.mxu0 0
    %520 = vmatmul.mubr.bf16.gmra.mxu0 %v314
    %v521 = vpop.f32.mrf.mxu0
    %v522 = vadd.f32 %v479, %v521
    %v523 = vpop.f32.mrf.mxu0
    %v524 = vadd.f32 %v480, %v523
    %v525 = vpop.f32.mrf.mxu0
    %v526 = vpop.f32.mrf.mxu0
    %527 = vdwg.mxu0
    %528 = vmatprep.subr.bf16.mxu0 %v442
    %529 = vmatpush1.bf16.msra.mxu0 %v441
    %530 = vmatprep.subr.bf16.mxu0 %v438
    %531 = vmatpush1.bf16.msra.mxu0 %v437
    %532 = vmatprep.subr.bf16.mxu0 %v434
    %533 = vmatpush1.bf16.msra.mxu0 %v433
    %534 = vmatprep.subr.bf16.mxu0 %v430
    %535 = vmatpush1.bf16.msra.mxu0 %v429
    %536 = vmatprep.subr.bf16.mxu0 %v426
    %537 = vmatpush1.bf16.msra.mxu0 %v425
    %538 = vmatprep.subr.bf16.mxu0 %v422
    %539 = vmatpush1.bf16.msra.mxu0 %v421
    %540 = vmatprep.subr.bf16.mxu0 %v418
    %541 = vmatpush1.bf16.msra.mxu0 %v417
    %542 = vmatprep.subr.bf16.mxu0 %v414
    %543 = vmatpush1.bf16.msra.mxu0 %v413
    %544 = vmatprep.subr.bf16.mxu0 0
    %545 = vmatpush2.bf16.msra.mxu0 0
    %546 = vmatprep.subr.bf16.mxu0 0
    %547 = vmatpush2.bf16.msra.mxu0 0
    %548 = vmatprep.subr.bf16.mxu0 0
    %549 = vmatpush2.bf16.msra.mxu0 0
    %550 = vmatprep.subr.bf16.mxu0 0
    %551 = vmatpush2.bf16.msra.mxu0 0
    %552 = vmatprep.subr.bf16.mxu0 0
    %553 = vmatpush2.bf16.msra.mxu0 0
    %554 = vmatprep.subr.bf16.mxu0 0
    %555 = vmatpush2.bf16.msra.mxu0 0
    %556 = vmatprep.subr.bf16.mxu0 0
    %557 = vmatpush2.bf16.msra.mxu0 0
    %558 = vmatprep.subr.bf16.mxu0 0
    %559 = vmatpush2.bf16.msra.mxu0 0
    %560 = vmatprep.mubr.bf16.mxu0 0
    %561 = vmatmul.mubr.bf16.gmra.mxu0 %v314
    %v562 = vpop.f32.mrf.mxu0
    %v563 = vadd.f32 %v481, %v562
    %v564 = vpop.f32.mrf.mxu0
    %v565 = vadd.f32 %v482, %v564
    %v566 = vpop.f32.mrf.mxu0
    %v567 = vpop.f32.mrf.mxu0
    %568 = vdwg.mxu0
    %v569 = vxor.u32 %v522, 2147483648
    %v570 = vxor.u32 %v524, 2147483648
    %v571 = vxor.u32 %v563, 2147483648
    %v572 = vmul.f32 %v569, 1.442695
    %v573 = vpow.pop %v572
    %v574 = vmul.f32 %v570, 1.442695
    %v575 = vpow.pop %v574
    %v576 = vmul.f32 %v571, 1.442695
    %v577 = vpow.pop %v576
    %v578 = vadd.f32 %v573, 1.0
    %v579 = vadd.f32 %v575, 1.0
    %v580 = vadd.f32 %v577, 1.0
    %v581 = vrcp.pop %v578
    %v582 = vmul.f32 1.0, %v581
    %v583 = vrcp.pop %v579
    %v584 = vmul.f32 1.0, %v583
    %v585 = vrcp.pop %v580
    %v586 = vmul.f32 1.0, %v585
    %v587 = vtanh.pop %v565
    %v588 = vmul.f32 %v584, %v313
    %v589 = vmul.f32 %v582, %v587
    %v590 = vadd.f32 %v588, %v589
    %v591 = vtanh.pop %v590
    %v592 = vmul.f32 %v586, %v591
    %v593 = vpack.c.bf16 %v592, %v592
    %v594 = vrot.slane %v198, 4
    %v595 = vrot.slane %v200, 4
    %v596 = vrot.slane %v275, 4
    %v597 = vrot.slane %v277, 4
    %602 = vmatprep.subr.bf16.mxu0 %v440
    %603 = vmatpush1.bf16.msra.mxu0 %v439
    %604 = vmatprep.subr.bf16.mxu0 %v436
    %605 = vmatpush1.bf16.msra.mxu0 %v435
    %606 = vmatprep.subr.bf16.mxu0 %v432
    %607 = vmatpush1.bf16.msra.mxu0 %v431
    %608 = vmatprep.subr.bf16.mxu0 %v428
    %609 = vmatpush1.bf16.msra.mxu0 %v427
    %610 = vmatprep.subr.bf16.mxu0 %v424
    %611 = vmatpush1.bf16.msra.mxu0 %v423
    %612 = vmatprep.subr.bf16.mxu0 %v420
    %613 = vmatpush1.bf16.msra.mxu0 %v419
    %614 = vmatprep.subr.bf16.mxu0 %v416
    %615 = vmatpush1.bf16.msra.mxu0 %v415
    %616 = vmatprep.subr.bf16.mxu0 %v412
    %617 = vmatpush1.bf16.msra.mxu0 %v411
    %618 = vmatprep.subr.bf16.mxu0 0
    %619 = vmatpush2.bf16.msra.mxu0 0
    %620 = vmatprep.subr.bf16.mxu0 0
    %621 = vmatpush2.bf16.msra.mxu0 0
    %622 = vmatprep.subr.bf16.mxu0 0
    %623 = vmatpush2.bf16.msra.mxu0 0
    %624 = vmatprep.subr.bf16.mxu0 0
    %625 = vmatpush2.bf16.msra.mxu0 0
    %626 = vmatprep.subr.bf16.mxu0 0
    %627 = vmatpush2.bf16.msra.mxu0 0
    %628 = vmatprep.subr.bf16.mxu0 0
    %629 = vmatpush2.bf16.msra.mxu0 0
    %630 = vmatprep.subr.bf16.mxu0 0
    %631 = vmatpush2.bf16.msra.mxu0 0
    %632 = vmatprep.subr.bf16.mxu0 0
    %633 = vmatpush2.bf16.msra.mxu0 0
    %634 = vmatprep.mubr.bf16.mxu0 0
    %635 = vmatmul.mubr.bf16.gmra.mxu0 %v593
    %v636 = vpop.f32.mrf.mxu0
    %v637 = vadd.f32 %v594, %v636
    %v638 = vpop.f32.mrf.mxu0
    %v639 = vadd.f32 %v595, %v638
    %v640 = vpop.f32.mrf.mxu0
    %v641 = vpop.f32.mrf.mxu0
    %642 = vdwg.mxu0
    %643 = vmatprep.subr.bf16.mxu0 %v442
    %644 = vmatpush1.bf16.msra.mxu0 %v441
    %645 = vmatprep.subr.bf16.mxu0 %v438
    %646 = vmatpush1.bf16.msra.mxu0 %v437
    %647 = vmatprep.subr.bf16.mxu0 %v434
    %648 = vmatpush1.bf16.msra.mxu0 %v433
    %649 = vmatprep.subr.bf16.mxu0 %v430
    %650 = vmatpush1.bf16.msra.mxu0 %v429
    %651 = vmatprep.subr.bf16.mxu0 %v426
    %652 = vmatpush1.bf16.msra.mxu0 %v425
    %653 = vmatprep.subr.bf16.mxu0 %v422
    %654 = vmatpush1.bf16.msra.mxu0 %v421
    %655 = vmatprep.subr.bf16.mxu0 %v418
    %656 = vmatpush1.bf16.msra.mxu0 %v417
    %657 = vmatprep.subr.bf16.mxu0 %v414
    %658 = vmatpush1.bf16.msra.mxu0 %v413
    %659 = vmatprep.subr.bf16.mxu0 0
    %660 = vmatpush2.bf16.msra.mxu0 0
    %661 = vmatprep.subr.bf16.mxu0 0
    %662 = vmatpush2.bf16.msra.mxu0 0
    %663 = vmatprep.subr.bf16.mxu0 0
    %664 = vmatpush2.bf16.msra.mxu0 0
    %665 = vmatprep.subr.bf16.mxu0 0
    %666 = vmatpush2.bf16.msra.mxu0 0
    %667 = vmatprep.subr.bf16.mxu0 0
    %668 = vmatpush2.bf16.msra.mxu0 0
    %669 = vmatprep.subr.bf16.mxu0 0
    %670 = vmatpush2.bf16.msra.mxu0 0
    %671 = vmatprep.subr.bf16.mxu0 0
    %672 = vmatpush2.bf16.msra.mxu0 0
    %673 = vmatprep.subr.bf16.mxu0 0
    %674 = vmatpush2.bf16.msra.mxu0 0
    %675 = vmatprep.mubr.bf16.mxu0 0
    %676 = vmatmul.mubr.bf16.gmra.mxu0 %v593
    %v677 = vpop.f32.mrf.mxu0
    %v678 = vadd.f32 %v596, %v677
    %v679 = vpop.f32.mrf.mxu0
    %v680 = vadd.f32 %v597, %v679
    %v681 = vpop.f32.mrf.mxu0
    %v682 = vpop.f32.mrf.mxu0
    %683 = vdwg.mxu0
    %v684 = vxor.u32 %v637, 2147483648
    %v685 = vxor.u32 %v639, 2147483648
    %v686 = vxor.u32 %v678, 2147483648
    %v687 = vmul.f32 %v684, 1.442695
    %v688 = vpow.pop %v687
    %v689 = vmul.f32 %v685, 1.442695
    %v690 = vpow.pop %v689
    %v691 = vmul.f32 %v686, 1.442695
    %v692 = vpow.pop %v691
    %v693 = vadd.f32 %v688, 1.0
    %v694 = vadd.f32 %v690, 1.0
    %v695 = vadd.f32 %v692, 1.0
    %v696 = vrcp.pop %v693
    %v697 = vmul.f32 1.0, %v696
    %v698 = vrcp.pop %v694
    %v699 = vmul.f32 1.0, %v698
    %v700 = vrcp.pop %v695
    %v701 = vmul.f32 1.0, %v700
    %v702 = vtanh.pop %v680
    %v703 = vmul.f32 %v699, %v590
    %v704 = vmul.f32 %v697, %v702
    %v705 = vadd.f32 %v703, %v704
    %v706 = vtanh.pop %v705
    %v707 = vmul.f32 %v701, %v706
    %v708 = vpack.c.bf16 %v707, %v707
    %v709 = vrot.slane %v198, 6
    %v710 = vrot.slane %v200, 6
    %v711 = vrot.slane %v275, 6
    %v712 = vrot.slane %v277, 6
    %717 = vmatprep.subr.bf16.mxu0 %v440
    %718 = vmatpush1.bf16.msra.mxu0 %v439
    %719 = vmatprep.subr.bf16.mxu0 %v436
    %720 = vmatpush1.bf16.msra.mxu0 %v435
    %721 = vmatprep.subr.bf16.mxu0 %v432
    %722 = vmatpush1.bf16.msra.mxu0 %v431
    %723 = vmatprep.subr.bf16.mxu0 %v428
    %724 = vmatpush1.bf16.msra.mxu0 %v427
    %725 = vmatprep.subr.bf16.mxu0 %v424
    %726 = vmatpush1.bf16.msra.mxu0 %v423
    %727 = vmatprep.subr.bf16.mxu0 %v420
    %728 = vmatpush1.bf16.msra.mxu0 %v419
    %729 = vmatprep.subr.bf16.mxu0 %v416
    %730 = vmatpush1.bf16.msra.mxu0 %v415
    %731 = vmatprep.subr.bf16.mxu0 %v412
    %732 = vmatpush1.bf16.msra.mxu0 %v411
    %733 = vmatprep.subr.bf16.mxu0 0
    %734 = vmatpush2.bf16.msra.mxu0 0
    %735 = vmatprep.subr.bf16.mxu0 0
    %736 = vmatpush2.bf16.msra.mxu0 0
    %737 = vmatprep.subr.bf16.mxu0 0
    %738 = vmatpush2.bf16.msra.mxu0 0
    %739 = vmatprep.subr.bf16.mxu0 0
    %740 = vmatpush2.bf16.msra.mxu0 0
    %741 = vmatprep.subr.bf16.mxu0 0
    %742 = vmatpush2.bf16.msra.mxu0 0
    %743 = vmatprep.subr.bf16.mxu0 0
    %744 = vmatpush2.bf16.msra.mxu0 0
    %745 = vmatprep.subr.bf16.mxu0 0
    %746 = vmatpush2.bf16.msra.mxu0 0
    %747 = vmatprep.subr.bf16.mxu0 0
    %748 = vmatpush2.bf16.msra.mxu0 0
    %749 = vmatprep.mubr.bf16.mxu0 0
    %750 = vmatmul.mubr.bf16.gmra.mxu0 %v708
    %v751 = vpop.f32.mrf.mxu0
    %v752 = vadd.f32 %v709, %v751
    %v753 = vpop.f32.mrf.mxu0
    %v754 = vadd.f32 %v710, %v753
    %v755 = vpop.f32.mrf.mxu0
    %v756 = vpop.f32.mrf.mxu0
    %757 = vdwg.mxu0
    %758 = vmatprep.subr.bf16.mxu0 %v442
    %759 = vmatpush1.bf16.msra.mxu0 %v441
    %760 = vmatprep.subr.bf16.mxu0 %v438
    %761 = vmatpush1.bf16.msra.mxu0 %v437
    %762 = vmatprep.subr.bf16.mxu0 %v434
    %763 = vmatpush1.bf16.msra.mxu0 %v433
    %764 = vmatprep.subr.bf16.mxu0 %v430
    %765 = vmatpush1.bf16.msra.mxu0 %v429
    %766 = vmatprep.subr.bf16.mxu0 %v426
    %767 = vmatpush1.bf16.msra.mxu0 %v425
    %768 = vmatprep.subr.bf16.mxu0 %v422
    %769 = vmatpush1.bf16.msra.mxu0 %v421
    %770 = vmatprep.subr.bf16.mxu0 %v418
    %771 = vmatpush1.bf16.msra.mxu0 %v417
    %772 = vmatprep.subr.bf16.mxu0 %v414
    %773 = vmatpush1.bf16.msra.mxu0 %v413
    %774 = vmatprep.subr.bf16.mxu0 0
    %775 = vmatpush2.bf16.msra.mxu0 0
    %776 = vmatprep.subr.bf16.mxu0 0
    %777 = vmatpush2.bf16.msra.mxu0 0
    %778 = vmatprep.subr.bf16.mxu0 0
    %779 = vmatpush2.bf16.msra.mxu0 0
    %780 = vmatprep.subr.bf16.mxu0 0
    %781 = vmatpush2.bf16.msra.mxu0 0
    %782 = vmatprep.subr.bf16.mxu0 0
    %783 = vmatpush2.bf16.msra.mxu0 0
    %784 = vmatprep.subr.bf16.mxu0 0
    %785 = vmatpush2.bf16.msra.mxu0 0
    %786 = vmatprep.subr.bf16.mxu0 0
    %787 = vmatpush2.bf16.msra.mxu0 0
    %788 = vmatprep.subr.bf16.mxu0 0
    %789 = vmatpush2.bf16.msra.mxu0 0
    %790 = vmatprep.mubr.bf16.mxu0 0
    %791 = vmatmul.mubr.bf16.gmra.mxu0 %v708
    %v792 = vpop.f32.mrf.mxu0
    %v793 = vadd.f32 %v711, %v792
    %v794 = vpop.f32.mrf.mxu0
    %v795 = vadd.f32 %v712, %v794
    %v796 = vpop.f32.mrf.mxu0
    %v797 = vpop.f32.mrf.mxu0
    %798 = vdwg.mxu0
    %v799 = vxor.u32 %v752, 2147483648
    %v800 = vxor.u32 %v754, 2147483648
    %v801 = vxor.u32 %v793, 2147483648
    %v802 = vmul.f32 %v799, 1.442695
    %v803 = vpow.pop %v802
    %v804 = vmul.f32 %v800, 1.442695
    %v805 = vpow.pop %v804
    %v806 = vmul.f32 %v801, 1.442695
    %v807 = vpow.pop %v806
    %v808 = vadd.f32 %v803, 1.0
    %v809 = vadd.f32 %v805, 1.0
    %v810 = vadd.f32 %v807, 1.0
    %v811 = vrcp.pop %v808
    %v812 = vmul.f32 1.0, %v811
    %v813 = vrcp.pop %v809
    %v814 = vmul.f32 1.0, %v813
    %v815 = vrcp.pop %v810
    %v816 = vmul.f32 1.0, %v815
    %v817 = vtanh.pop %v795
    %v818 = vmul.f32 %v814, %v705
    %v819 = vmul.f32 %v812, %v817
    %v820 = vadd.f32 %v818, %v819
    %v821 = vtanh.pop %v820
    %v822 = vmul.f32 %v816, %v821
    %v823 = vpack.c.bf16 %v822, %v822
    %824 = vmatprep.subr.bf16.mxu0 %v440
    %825 = vmatpush1.bf16.msra.mxu0 %v439
    %826 = vmatprep.subr.bf16.mxu0 %v436
    %827 = vmatpush1.bf16.msra.mxu0 %v435
    %828 = vmatprep.subr.bf16.mxu0 %v432
    %829 = vmatpush1.bf16.msra.mxu0 %v431
    %830 = vmatprep.subr.bf16.mxu0 %v428
    %831 = vmatpush1.bf16.msra.mxu0 %v427
    %832 = vmatprep.subr.bf16.mxu0 %v424
    %833 = vmatpush1.bf16.msra.mxu0 %v423
    %834 = vmatprep.subr.bf16.mxu0 %v420
    %835 = vmatpush1.bf16.msra.mxu0 %v419
    %836 = vmatprep.subr.bf16.mxu0 %v416
    %837 = vmatpush1.bf16.msra.mxu0 %v415
    %838 = vmatprep.subr.bf16.mxu0 %v412
    %839 = vmatpush1.bf16.msra.mxu0 %v411
    %840 = vmatprep.subr.bf16.mxu0 0
    %841 = vmatpush2.bf16.msra.mxu0 0
    %842 = vmatprep.subr.bf16.mxu0 0
    %843 = vmatpush2.bf16.msra.mxu0 0
    %844 = vmatprep.subr.bf16.mxu0 0
    %845 = vmatpush2.bf16.msra.mxu0 0
    %846 = vmatprep.subr.bf16.mxu0 0
    %847 = vmatpush2.bf16.msra.mxu0 0
    %848 = vmatprep.subr.bf16.mxu0 0
    %849 = vmatpush2.bf16.msra.mxu0 0
    %850 = vmatprep.subr.bf16.mxu0 0
    %851 = vmatpush2.bf16.msra.mxu0 0
    %852 = vmatprep.subr.bf16.mxu0 0
    %853 = vmatpush2.bf16.msra.mxu0 0
    %854 = vmatprep.subr.bf16.mxu0 0
    %855 = vmatpush2.bf16.msra.mxu0 0
    %856 = vmatprep.mubr.bf16.mxu0 0
    %857 = vmatmul.mubr.bf16.gmra.mxu0 %v823
    %v858 = vpop.f32.mrf.mxu0
    %v859 = vadd.f32 %v204, %v858
    %v860 = vpop.f32.mrf.mxu0
    %v861 = vadd.f32 %v206, %v860
    %v862 = vpop.f32.mrf.mxu0
    %v863 = vpop.f32.mrf.mxu0
    %864 = vdwg.mxu0
    %865 = vmatprep.subr.bf16.mxu0 %v442
    %866 = vmatpush1.bf16.msra.mxu0 %v441
    %867 = vmatprep.subr.bf16.mxu0 %v438
    %868 = vmatpush1.bf16.msra.mxu0 %v437
    %869 = vmatprep.subr.bf16.mxu0 %v434
    %870 = vmatpush1.bf16.msra.mxu0 %v433
    %871 = vmatprep.subr.bf16.mxu0 %v430
    %872 = vmatpush1.bf16.msra.mxu0 %v429
    %873 = vmatprep.subr.bf16.mxu0 %v426
    %874 = vmatpush1.bf16.msra.mxu0 %v425
    %875 = vmatprep.subr.bf16.mxu0 %v422
    %876 = vmatpush1.bf16.msra.mxu0 %v421
    %877 = vmatprep.subr.bf16.mxu0 %v418
    %878 = vmatpush1.bf16.msra.mxu0 %v417
    %879 = vmatprep.subr.bf16.mxu0 %v414
    %880 = vmatpush1.bf16.msra.mxu0 %v413
    %881 = vmatprep.subr.bf16.mxu0 0
    %882 = vmatpush2.bf16.msra.mxu0 0
    %883 = vmatprep.subr.bf16.mxu0 0
    %884 = vmatpush2.bf16.msra.mxu0 0
    %885 = vmatprep.subr.bf16.mxu0 0
    %886 = vmatpush2.bf16.msra.mxu0 0
    %887 = vmatprep.subr.bf16.mxu0 0
    %888 = vmatpush2.bf16.msra.mxu0 0
    %889 = vmatprep.subr.bf16.mxu0 0
    %890 = vmatpush2.bf16.msra.mxu0 0
    %891 = vmatprep.subr.bf16.mxu0 0
    %892 = vmatpush2.bf16.msra.mxu0 0
    %893 = vmatprep.subr.bf16.mxu0 0
    %894 = vmatpush2.bf16.msra.mxu0 0
    %895 = vmatprep.subr.bf16.mxu0 0
    %896 = vmatpush2.bf16.msra.mxu0 0
    %897 = vmatprep.mubr.bf16.mxu0 0
    %898 = vmatmul.mubr.bf16.gmra.mxu0 %v823
    %v899 = vpop.f32.mrf.mxu0
    %v900 = vadd.f32 %v281, %v899
    %v901 = vpop.f32.mrf.mxu0
    %v902 = vadd.f32 %v283, %v901
    %v903 = vpop.f32.mrf.mxu0
    %v904 = vpop.f32.mrf.mxu0
    %905 = vdwg.mxu0
    %v906 = vxor.u32 %v859, 2147483648
    %v907 = vxor.u32 %v861, 2147483648
    %v908 = vxor.u32 %v900, 2147483648
    %v909 = vmul.f32 %v906, 1.442695
    %v910 = vpow.pop %v909
    %v911 = vmul.f32 %v907, 1.442695
    %v912 = vpow.pop %v911
    %v913 = vmul.f32 %v908, 1.442695
    %v914 = vpow.pop %v913
    %v915 = vadd.f32 %v910, 1.0
    %v916 = vadd.f32 %v912, 1.0
    %v917 = vadd.f32 %v914, 1.0
    %v918 = vrcp.pop %v915
    %v919 = vmul.f32 1.0, %v918
    %v920 = vrcp.pop %v916
    %v921 = vmul.f32 1.0, %v920
    %v922 = vrcp.pop %v917
    %v923 = vmul.f32 1.0, %v922
    %v924 = vtanh.pop %v902
    %v925 = vmul.f32 %v921, %v820
    %v926 = vmul.f32 %v919, %v924
    %v927 = vadd.f32 %v925, %v926
    %v928 = vtanh.pop %v927
    %v929 = vmul.f32 %v923, %v928
    %v930 = vpack.c.bf16 %v929, %v929
    %v935 = vrot.slane %v204, 2
    %v936 = vrot.slane %v206, 2
    %v937 = vrot.slane %v281, 2
    %v938 = vrot.slane %v283, 2
    %943 = vmatprep.subr.bf16.mxu0 %v440
    %944 = vmatpush1.bf16.msra.mxu0 %v439
    %945 = vmatprep.subr.bf16.mxu0 %v436
    %946 = vmatpush1.bf16.msra.mxu0 %v435
    %947 = vmatprep.subr.bf16.mxu0 %v432
    %948 = vmatpush1.bf16.msra.mxu0 %v431
    %949 = vmatprep.subr.bf16.mxu0 %v428
    %950 = vmatpush1.bf16.msra.mxu0 %v427
    %951 = vmatprep.subr.bf16.mxu0 %v424
    %952 = vmatpush1.bf16.msra.mxu0 %v423
    %953 = vmatprep.subr.bf16.mxu0 %v420
    %954 = vmatpush1.bf16.msra.mxu0 %v419
    %955 = vmatprep.subr.bf16.mxu0 %v416
    %956 = vmatpush1.bf16.msra.mxu0 %v415
    %957 = vmatprep.subr.bf16.mxu0 %v412
    %958 = vmatpush1.bf16.msra.mxu0 %v411
    %959 = vmatprep.subr.bf16.mxu0 0
    %960 = vmatpush2.bf16.msra.mxu0 0
    %961 = vmatprep.subr.bf16.mxu0 0
    %962 = vmatpush2.bf16.msra.mxu0 0
    %963 = vmatprep.subr.bf16.mxu0 0
    %964 = vmatpush2.bf16.msra.mxu0 0
    %965 = vmatprep.subr.bf16.mxu0 0
    %966 = vmatpush2.bf16.msra.mxu0 0
    %967 = vmatprep.subr.bf16.mxu0 0
    %968 = vmatpush2.bf16.msra.mxu0 0
    %969 = vmatprep.subr.bf16.mxu0 0
    %970 = vmatpush2.bf16.msra.mxu0 0
    %971 = vmatprep.subr.bf16.mxu0 0
    %972 = vmatpush2.bf16.msra.mxu0 0
    %973 = vmatprep.subr.bf16.mxu0 0
    %974 = vmatpush2.bf16.msra.mxu0 0
    %975 = vmatprep.mubr.bf16.mxu0 0
    %976 = vmatmul.mubr.bf16.gmra.mxu0 %v930
    %v977 = vpop.f32.mrf.mxu0
    %v978 = vadd.f32 %v935, %v977
    %v979 = vpop.f32.mrf.mxu0
    %v980 = vadd.f32 %v936, %v979
    %v981 = vpop.f32.mrf.mxu0
    %v982 = vpop.f32.mrf.mxu0
    %983 = vdwg.mxu0
    %984 = vmatprep.subr.bf16.mxu0 %v442
    %985 = vmatpush1.bf16.msra.mxu0 %v441
    %986 = vmatprep.subr.bf16.mxu0 %v438
    %987 = vmatpush1.bf16.msra.mxu0 %v437
    %988 = vmatprep.subr.bf16.mxu0 %v434
    %989 = vmatpush1.bf16.msra.mxu0 %v433
    %990 = vmatprep.subr.bf16.mxu0 %v430
    %991 = vmatpush1.bf16.msra.mxu0 %v429
    %992 = vmatprep.subr.bf16.mxu0 %v426
    %993 = vmatpush1.bf16.msra.mxu0 %v425
    %994 = vmatprep.subr.bf16.mxu0 %v422
    %995 = vmatpush1.bf16.msra.mxu0 %v421
    %996 = vmatprep.subr.bf16.mxu0 %v418
    %997 = vmatpush1.bf16.msra.mxu0 %v417
    %998 = vmatprep.subr.bf16.mxu0 %v414
    %999 = vmatpush1.bf16.msra.mxu0 %v413
    %1000 = vmatprep.subr.bf16.mxu0 0
    %1001 = vmatpush2.bf16.msra.mxu0 0
    %1002 = vmatprep.subr.bf16.mxu0 0
    %1003 = vmatpush2.bf16.msra.mxu0 0
    %1004 = vmatprep.subr.bf16.mxu0 0
    %1005 = vmatpush2.bf16.msra.mxu0 0
    %1006 = vmatprep.subr.bf16.mxu0 0
    %1007 = vmatpush2.bf16.msra.mxu0 0
    %1008 = vmatprep.subr.bf16.mxu0 0
    %1009 = vmatpush2.bf16.msra.mxu0 0
    %1010 = vmatprep.subr.bf16.mxu0 0
    %1011 = vmatpush2.bf16.msra.mxu0 0
    %1012 = vmatprep.subr.bf16.mxu0 0
    %1013 = vmatpush2.bf16.msra.mxu0 0
    %1014 = vmatprep.subr.bf16.mxu0 0
    %1015 = vmatpush2.bf16.msra.mxu0 0
    %1016 = vmatprep.mubr.bf16.mxu0 0
    %1017 = vmatmul.mubr.bf16.gmra.mxu0 %v930
    %v1018 = vpop.f32.mrf.mxu0
    %v1019 = vadd.f32 %v937, %v1018
    %v1020 = vpop.f32.mrf.mxu0
    %v1021 = vadd.f32 %v938, %v1020
    %v1022 = vpop.f32.mrf.mxu0
    %v1023 = vpop.f32.mrf.mxu0
    %1024 = vdwg.mxu0
    %v1025 = vxor.u32 %v978, 2147483648
    %v1026 = vxor.u32 %v980, 2147483648
    %v1027 = vxor.u32 %v1019, 2147483648
    %v1028 = vmul.f32 %v1025, 1.442695
    %v1029 = vpow.pop %v1028
    %v1030 = vmul.f32 %v1026, 1.442695
    %v1031 = vpow.pop %v1030
    %v1032 = vmul.f32 %v1027, 1.442695
    %v1033 = vpow.pop %v1032
    %v1034 = vadd.f32 %v1029, 1.0
    %v1035 = vadd.f32 %v1031, 1.0
    %v1036 = vadd.f32 %v1033, 1.0
    %v1037 = vrcp.pop %v1034
    %v1038 = vmul.f32 1.0, %v1037
    %v1039 = vrcp.pop %v1035
    %v1040 = vmul.f32 1.0, %v1039
    %v1041 = vrcp.pop %v1036
    %v1042 = vmul.f32 1.0, %v1041
    %v1043 = vtanh.pop %v1021
    %v1044 = vmul.f32 %v1040, %v927
    %v1045 = vmul.f32 %v1038, %v1043
    %v1046 = vadd.f32 %v1044, %v1045
    %v1047 = vtanh.pop %v1046
    %v1048 = vmul.f32 %v1042, %v1047
    %v1049 = vpack.c.bf16 %v1048, %v1048
    %v1050 = vrot.slane %v204, 4
    %v1051 = vrot.slane %v206, 4
    %v1052 = vrot.slane %v281, 4
    %v1053 = vrot.slane %v283, 4
    %1058 = vmatprep.subr.bf16.mxu0 %v440
    %1059 = vmatpush1.bf16.msra.mxu0 %v439
    %1060 = vmatprep.subr.bf16.mxu0 %v436
    %1061 = vmatpush1.bf16.msra.mxu0 %v435
    %1062 = vmatprep.subr.bf16.mxu0 %v432
    %1063 = vmatpush1.bf16.msra.mxu0 %v431
    %1064 = vmatprep.subr.bf16.mxu0 %v428
    %1065 = vmatpush1.bf16.msra.mxu0 %v427
    %1066 = vmatprep.subr.bf16.mxu0 %v424
    %1067 = vmatpush1.bf16.msra.mxu0 %v423
    %1068 = vmatprep.subr.bf16.mxu0 %v420
    %1069 = vmatpush1.bf16.msra.mxu0 %v419
    %1070 = vmatprep.subr.bf16.mxu0 %v416
    %1071 = vmatpush1.bf16.msra.mxu0 %v415
    %1072 = vmatprep.subr.bf16.mxu0 %v412
    %1073 = vmatpush1.bf16.msra.mxu0 %v411
    %1074 = vmatprep.subr.bf16.mxu0 0
    %1075 = vmatpush2.bf16.msra.mxu0 0
    %1076 = vmatprep.subr.bf16.mxu0 0
    %1077 = vmatpush2.bf16.msra.mxu0 0
    %1078 = vmatprep.subr.bf16.mxu0 0
    %1079 = vmatpush2.bf16.msra.mxu0 0
    %1080 = vmatprep.subr.bf16.mxu0 0
    %1081 = vmatpush2.bf16.msra.mxu0 0
    %1082 = vmatprep.subr.bf16.mxu0 0
    %1083 = vmatpush2.bf16.msra.mxu0 0
    %1084 = vmatprep.subr.bf16.mxu0 0
    %1085 = vmatpush2.bf16.msra.mxu0 0
    %1086 = vmatprep.subr.bf16.mxu0 0
    %1087 = vmatpush2.bf16.msra.mxu0 0
    %1088 = vmatprep.subr.bf16.mxu0 0
    %1089 = vmatpush2.bf16.msra.mxu0 0
    %1090 = vmatprep.mubr.bf16.mxu0 0
    %1091 = vmatmul.mubr.bf16.gmra.mxu0 %v1049
    %v1092 = vpop.f32.mrf.mxu0
    %v1093 = vadd.f32 %v1050, %v1092
    %v1094 = vpop.f32.mrf.mxu0
    %v1095 = vadd.f32 %v1051, %v1094
    %v1096 = vpop.f32.mrf.mxu0
    %v1097 = vpop.f32.mrf.mxu0
    %1098 = vdwg.mxu0
    %1099 = vmatprep.subr.bf16.mxu0 %v442
    %1100 = vmatpush1.bf16.msra.mxu0 %v441
    %1101 = vmatprep.subr.bf16.mxu0 %v438
    %1102 = vmatpush1.bf16.msra.mxu0 %v437
    %1103 = vmatprep.subr.bf16.mxu0 %v434
    %1104 = vmatpush1.bf16.msra.mxu0 %v433
    %1105 = vmatprep.subr.bf16.mxu0 %v430
    %1106 = vmatpush1.bf16.msra.mxu0 %v429
    %1107 = vmatprep.subr.bf16.mxu0 %v426
    %1108 = vmatpush1.bf16.msra.mxu0 %v425
    %1109 = vmatprep.subr.bf16.mxu0 %v422
    %1110 = vmatpush1.bf16.msra.mxu0 %v421
    %1111 = vmatprep.subr.bf16.mxu0 %v418
    %1112 = vmatpush1.bf16.msra.mxu0 %v417
    %1113 = vmatprep.subr.bf16.mxu0 %v414
    %1114 = vmatpush1.bf16.msra.mxu0 %v413
    %1115 = vmatprep.subr.bf16.mxu0 0
    %1116 = vmatpush2.bf16.msra.mxu0 0
    %1117 = vmatprep.subr.bf16.mxu0 0
    %1118 = vmatpush2.bf16.msra.mxu0 0
    %1119 = vmatprep.subr.bf16.mxu0 0
    %1120 = vmatpush2.bf16.msra.mxu0 0
    %1121 = vmatprep.subr.bf16.mxu0 0
    %1122 = vmatpush2.bf16.msra.mxu0 0
    %1123 = vmatprep.subr.bf16.mxu0 0
    %1124 = vmatpush2.bf16.msra.mxu0 0
    %1125 = vmatprep.subr.bf16.mxu0 0
    %1126 = vmatpush2.bf16.msra.mxu0 0
    %1127 = vmatprep.subr.bf16.mxu0 0
    %1128 = vmatpush2.bf16.msra.mxu0 0
    %1129 = vmatprep.subr.bf16.mxu0 0
    %1130 = vmatpush2.bf16.msra.mxu0 0
    %1131 = vmatprep.mubr.bf16.mxu0 0
    %1132 = vmatmul.mubr.bf16.gmra.mxu0 %v1049
    %v1133 = vpop.f32.mrf.mxu0
    %v1134 = vadd.f32 %v1052, %v1133
    %v1135 = vpop.f32.mrf.mxu0
    %v1136 = vadd.f32 %v1053, %v1135
    %v1137 = vpop.f32.mrf.mxu0
    %v1138 = vpop.f32.mrf.mxu0
    %1139 = vdwg.mxu0
    %v1140 = vxor.u32 %v1093, 2147483648
    %v1141 = vxor.u32 %v1095, 2147483648
    %v1142 = vxor.u32 %v1134, 2147483648
    %v1143 = vmul.f32 %v1140, 1.442695
    %v1144 = vpow.pop %v1143
    %v1145 = vmul.f32 %v1141, 1.442695
    %v1146 = vpow.pop %v1145
    %v1147 = vmul.f32 %v1142, 1.442695
    %v1148 = vpow.pop %v1147
    %v1149 = vadd.f32 %v1144, 1.0
    %v1150 = vadd.f32 %v1146, 1.0
    %v1151 = vadd.f32 %v1148, 1.0
    %v1152 = vrcp.pop %v1149
    %v1153 = vmul.f32 1.0, %v1152
    %v1154 = vrcp.pop %v1150
    %v1155 = vmul.f32 1.0, %v1154
    %v1156 = vrcp.pop %v1151
    %v1157 = vmul.f32 1.0, %v1156
    %v1158 = vtanh.pop %v1136
    %v1159 = vmul.f32 %v1155, %v1046
    %v1160 = vmul.f32 %v1153, %v1158
    %v1161 = vadd.f32 %v1159, %v1160
    %v1162 = vtanh.pop %v1161
    %v1163 = vmul.f32 %v1157, %v1162
    %v1164 = vpack.c.bf16 %v1163, %v1163
    %v1165 = vrot.slane %v204, 6
    %v1166 = vrot.slane %v206, 6
    %v1167 = vrot.slane %v281, 6
    %v1168 = vrot.slane %v283, 6
    %1173 = vmatprep.subr.bf16.mxu0 %v440
    %1174 = vmatpush1.bf16.msra.mxu0 %v439
    %1175 = vmatprep.subr.bf16.mxu0 %v436
    %1176 = vmatpush1.bf16.msra.mxu0 %v435
    %1177 = vmatprep.subr.bf16.mxu0 %v432
    %1178 = vmatpush1.bf16.msra.mxu0 %v431
    %1179 = vmatprep.subr.bf16.mxu0 %v428
    %1180 = vmatpush1.bf16.msra.mxu0 %v427
    %1181 = vmatprep.subr.bf16.mxu0 %v424
    %1182 = vmatpush1.bf16.msra.mxu0 %v423
    %1183 = vmatprep.subr.bf16.mxu0 %v420
    %1184 = vmatpush1.bf16.msra.mxu0 %v419
    %1185 = vmatprep.subr.bf16.mxu0 %v416
    %1186 = vmatpush1.bf16.msra.mxu0 %v415
    %1187 = vmatprep.subr.bf16.mxu0 %v412
    %1188 = vmatpush1.bf16.msra.mxu0 %v411
    %1189 = vmatprep.subr.bf16.mxu0 0
    %1190 = vmatpush2.bf16.msra.mxu0 0
    %1191 = vmatprep.subr.bf16.mxu0 0
    %1192 = vmatpush2.bf16.msra.mxu0 0
    %1193 = vmatprep.subr.bf16.mxu0 0
    %1194 = vmatpush2.bf16.msra.mxu0 0
    %1195 = vmatprep.subr.bf16.mxu0 0
    %1196 = vmatpush2.bf16.msra.mxu0 0
    %1197 = vmatprep.subr.bf16.mxu0 0
    %1198 = vmatpush2.bf16.msra.mxu0 0
    %1199 = vmatprep.subr.bf16.mxu0 0
    %1200 = vmatpush2.bf16.msra.mxu0 0
    %1201 = vmatprep.subr.bf16.mxu0 0
    %1202 = vmatpush2.bf16.msra.mxu0 0
    %1203 = vmatprep.subr.bf16.mxu0 0
    %1204 = vmatpush2.bf16.msra.mxu0 0
    %1205 = vmatprep.mubr.bf16.mxu0 0
    %1206 = vmatmul.mubr.bf16.gmra.mxu0 %v1164
    %v1207 = vpop.f32.mrf.mxu0
    %v1208 = vadd.f32 %v1165, %v1207
    %v1209 = vpop.f32.mrf.mxu0
    %v1210 = vadd.f32 %v1166, %v1209
    %v1211 = vpop.f32.mrf.mxu0
    %v1212 = vpop.f32.mrf.mxu0
    %1213 = vdwg.mxu0
    %1214 = vmatprep.subr.bf16.mxu0 %v442
    %1215 = vmatpush1.bf16.msra.mxu0 %v441
    %1216 = vmatprep.subr.bf16.mxu0 %v438
    %1217 = vmatpush1.bf16.msra.mxu0 %v437
    %1218 = vmatprep.subr.bf16.mxu0 %v434
    %1219 = vmatpush1.bf16.msra.mxu0 %v433
    %1220 = vmatprep.subr.bf16.mxu0 %v430
    %1221 = vmatpush1.bf16.msra.mxu0 %v429
    %1222 = vmatprep.subr.bf16.mxu0 %v426
    %1223 = vmatpush1.bf16.msra.mxu0 %v425
    %1224 = vmatprep.subr.bf16.mxu0 %v422
    %1225 = vmatpush1.bf16.msra.mxu0 %v421
    %1226 = vmatprep.subr.bf16.mxu0 %v418
    %1227 = vmatpush1.bf16.msra.mxu0 %v417
    %1228 = vmatprep.subr.bf16.mxu0 %v414
    %1229 = vmatpush1.bf16.msra.mxu0 %v413
    %1230 = vmatprep.subr.bf16.mxu0 0
    %1231 = vmatpush2.bf16.msra.mxu0 0
    %1232 = vmatprep.subr.bf16.mxu0 0
    %1233 = vmatpush2.bf16.msra.mxu0 0
    %1234 = vmatprep.subr.bf16.mxu0 0
    %1235 = vmatpush2.bf16.msra.mxu0 0
    %1236 = vmatprep.subr.bf16.mxu0 0
    %1237 = vmatpush2.bf16.msra.mxu0 0
    %1238 = vmatprep.subr.bf16.mxu0 0
    %1239 = vmatpush2.bf16.msra.mxu0 0
    %1240 = vmatprep.subr.bf16.mxu0 0
    %1241 = vmatpush2.bf16.msra.mxu0 0
    %1242 = vmatprep.subr.bf16.mxu0 0
    %1243 = vmatpush2.bf16.msra.mxu0 0
    %1244 = vmatprep.subr.bf16.mxu0 0
    %1245 = vmatpush2.bf16.msra.mxu0 0
    %1246 = vmatprep.mubr.bf16.mxu0 0
    %1247 = vmatmul.mubr.bf16.gmra.mxu0 %v1164
    %v1248 = vpop.f32.mrf.mxu0
    %v1249 = vadd.f32 %v1167, %v1248
    %v1250 = vpop.f32.mrf.mxu0
    %v1251 = vadd.f32 %v1168, %v1250
    %v1252 = vpop.f32.mrf.mxu0
    %v1253 = vpop.f32.mrf.mxu0
    %1254 = vdwg.mxu0
    %v1255 = vxor.u32 %v1208, 2147483648
    %v1256 = vxor.u32 %v1210, 2147483648
    %v1257 = vxor.u32 %v1249, 2147483648
    %v1258 = vmul.f32 %v1255, 1.442695
    %v1259 = vpow.pop %v1258
    %v1260 = vmul.f32 %v1256, 1.442695
    %v1261 = vpow.pop %v1260
    %v1262 = vmul.f32 %v1257, 1.442695
    %v1263 = vpow.pop %v1262
    %v1264 = vadd.f32 %v1259, 1.0
    %v1265 = vadd.f32 %v1261, 1.0
    %v1266 = vadd.f32 %v1263, 1.0
    %v1267 = vrcp.pop %v1264
    %v1268 = vmul.f32 1.0, %v1267
    %v1269 = vrcp.pop %v1265
    %v1270 = vmul.f32 1.0, %v1269
    %v1271 = vrcp.pop %v1266
    %v1272 = vmul.f32 1.0, %v1271
    %v1273 = vtanh.pop %v1251
    %v1274 = vmul.f32 %v1270, %v1161
    %v1275 = vmul.f32 %v1268, %v1273
    %v1276 = vadd.f32 %v1274, %v1275
    %v1277 = vtanh.pop %v1276
    %v1278 = vmul.f32 %v1272, %v1277
    %v1279 = vpack.c.bf16 %v1278, %v1278
    %1280 = vmatprep.subr.bf16.mxu0 %v440
    %1281 = vmatpush1.bf16.msra.mxu0 %v439
    %1282 = vmatprep.subr.bf16.mxu0 %v436
    %1283 = vmatpush1.bf16.msra.mxu0 %v435
    %1284 = vmatprep.subr.bf16.mxu0 %v432
    %1285 = vmatpush1.bf16.msra.mxu0 %v431
    %1286 = vmatprep.subr.bf16.mxu0 %v428
    %1287 = vmatpush1.bf16.msra.mxu0 %v427
    %1288 = vmatprep.subr.bf16.mxu0 %v424
    %1289 = vmatpush1.bf16.msra.mxu0 %v423
    %1290 = vmatprep.subr.bf16.mxu0 %v420
    %1291 = vmatpush1.bf16.msra.mxu0 %v419
    %1292 = vmatprep.subr.bf16.mxu0 %v416
    %1293 = vmatpush1.bf16.msra.mxu0 %v415
    %1294 = vmatprep.subr.bf16.mxu0 %v412
    %1295 = vmatpush1.bf16.msra.mxu0 %v411
    %1296 = vmatprep.subr.bf16.mxu0 0
    %1297 = vmatpush2.bf16.msra.mxu0 0
    %1298 = vmatprep.subr.bf16.mxu0 0
    %1299 = vmatpush2.bf16.msra.mxu0 0
    %1300 = vmatprep.subr.bf16.mxu0 0
    %1301 = vmatpush2.bf16.msra.mxu0 0
    %1302 = vmatprep.subr.bf16.mxu0 0
    %1303 = vmatpush2.bf16.msra.mxu0 0
    %1304 = vmatprep.subr.bf16.mxu0 0
    %1305 = vmatpush2.bf16.msra.mxu0 0
    %1306 = vmatprep.subr.bf16.mxu0 0
    %1307 = vmatpush2.bf16.msra.mxu0 0
    %1308 = vmatprep.subr.bf16.mxu0 0
    %1309 = vmatpush2.bf16.msra.mxu0 0
    %1310 = vmatprep.subr.bf16.mxu0 0
    %1311 = vmatpush2.bf16.msra.mxu0 0
    %1312 = vmatprep.mubr.bf16.mxu0 0
    %1313 = vmatmul.mubr.bf16.gmra.mxu0 %v1279
    %v1314 = vpop.f32.mrf.mxu0
    %v1315 = vadd.f32 %v107, %v1314
    %v1316 = vpop.f32.mrf.mxu0
    %v1317 = vadd.f32 %v111, %v1316
    %v1318 = vpop.f32.mrf.mxu0
    %v1319 = vpop.f32.mrf.mxu0
    %1320 = vdwg.mxu0
    %1321 = vmatprep.subr.bf16.mxu0 %v442
    %1322 = vmatpush1.bf16.msra.mxu0 %v441
    %1323 = vmatprep.subr.bf16.mxu0 %v438
    %1324 = vmatpush1.bf16.msra.mxu0 %v437
    %1325 = vmatprep.subr.bf16.mxu0 %v434
    %1326 = vmatpush1.bf16.msra.mxu0 %v433
    %1327 = vmatprep.subr.bf16.mxu0 %v430
    %1328 = vmatpush1.bf16.msra.mxu0 %v429
    %1329 = vmatprep.subr.bf16.mxu0 %v426
    %1330 = vmatpush1.bf16.msra.mxu0 %v425
    %1331 = vmatprep.subr.bf16.mxu0 %v422
    %1332 = vmatpush1.bf16.msra.mxu0 %v421
    %1333 = vmatprep.subr.bf16.mxu0 %v418
    %1334 = vmatpush1.bf16.msra.mxu0 %v417
    %1335 = vmatprep.subr.bf16.mxu0 %v414
    %1336 = vmatpush1.bf16.msra.mxu0 %v413
    %1337 = vmatprep.subr.bf16.mxu0 0
    %1338 = vmatpush2.bf16.msra.mxu0 0
    %1339 = vmatprep.subr.bf16.mxu0 0
    %1340 = vmatpush2.bf16.msra.mxu0 0
    %1341 = vmatprep.subr.bf16.mxu0 0
    %1342 = vmatpush2.bf16.msra.mxu0 0
    %1343 = vmatprep.subr.bf16.mxu0 0
    %1344 = vmatpush2.bf16.msra.mxu0 0
    %1345 = vmatprep.subr.bf16.mxu0 0
    %1346 = vmatpush2.bf16.msra.mxu0 0
    %1347 = vmatprep.subr.bf16.mxu0 0
    %1348 = vmatpush2.bf16.msra.mxu0 0
    %1349 = vmatprep.subr.bf16.mxu0 0
    %1350 = vmatpush2.bf16.msra.mxu0 0
    %1351 = vmatprep.subr.bf16.mxu0 0
    %1352 = vmatpush2.bf16.msra.mxu0 0
    %1353 = vmatprep.mubr.bf16.mxu0 0
    %1354 = vmatmul.mubr.bf16.gmra.mxu0 %v1279
    %v1355 = vpop.f32.mrf.mxu0
    %v1356 = vadd.f32 %v115, %v1355
    %v1357 = vpop.f32.mrf.mxu0
    %v1358 = vadd.f32 %v119, %v1357
    %v1359 = vpop.f32.mrf.mxu0
    %v1360 = vpop.f32.mrf.mxu0
    %1361 = vdwg.mxu0
    %v1362 = vxor.u32 %v1315, 2147483648
    %v1363 = vxor.u32 %v1317, 2147483648
    %v1364 = vxor.u32 %v1356, 2147483648
    %v1365 = vmul.f32 %v1362, 1.442695
    %v1366 = vpow.pop %v1365
    %v1367 = vmul.f32 %v1363, 1.442695
    %v1368 = vpow.pop %v1367
    %v1369 = vmul.f32 %v1364, 1.442695
    %v1370 = vpow.pop %v1369
    %v1371 = vadd.f32 %v1366, 1.0
    %v1372 = vadd.f32 %v1368, 1.0
    %v1373 = vadd.f32 %v1370, 1.0
    %v1374 = vrcp.pop %v1371
    %v1375 = vmul.f32 1.0, %v1374
    %v1376 = vrcp.pop %v1372
    %v1377 = vmul.f32 1.0, %v1376
    %v1378 = vrcp.pop %v1373
    %v1379 = vmul.f32 1.0, %v1378
    %v1380 = vtanh.pop %v1358
    %v1381 = vmul.f32 %v1377, %v1276
    %v1382 = vmul.f32 %v1375, %v1380
    %v1383 = vadd.f32 %v1381, %v1382
    %v1384 = vtanh.pop %v1383
    %v1385 = vmul.f32 %v1379, %v1384
    %v1386 = vld [vmem:[#allocation7] sm:$0xff]
    %v1387 = vld [vmem:[#allocation7 + $0x8] sm:$0xff]
    %v1388 = vld [vmem:[#allocation7 + $0x10] sm:$0xff]
    %v1389 = vld [vmem:[#allocation7 + $0x18] sm:$0xff]
    %v1390 = vld [vmem:[#allocation7 + $0x20] sm:$0xff]
    %v1391 = vld [vmem:[#allocation7 + $0x28] sm:$0xff]
    %v1392 = vld [vmem:[#allocation7 + $0x30] sm:$0xff]
    %v1393 = vld [vmem:[#allocation7 + $0x38] sm:$0xff]
    %v1394 = vld [vmem:[#allocation7 + $0x40] sm:$0xff]
    %v1395 = vld [vmem:[#allocation7 + $0x48] sm:$0xff]
    %v1396 = vld [vmem:[#allocation7 + $0x50] sm:$0xff]
    %v1397 = vld [vmem:[#allocation7 + $0x58] sm:$0xff]
    %v1398 = vld [vmem:[#allocation7 + $0x60] sm:$0xff]
    %v1399 = vld [vmem:[#allocation7 + $0x68] sm:$0xff]
    %v1400 = vld [vmem:[#allocation7 + $0x70] sm:$0xff]
    %v1401 = vld [vmem:[#allocation7 + $0x78] sm:$0xff]
    %v1402 = vld [vmem:[%s5] sm:$0x1]
    %v1404 = vlaneseq
    %v1405 = vshrl.u32 %v1404, 7
    %v1406 = vsub.s32 0, %v1405
    %v1407 = vrot.slane %v1402, %v1406
    %1409 = vmatprep.subr.mxu0 0.0
    %1410 = vmatpush1.msra.mxu0 %v1401
    %1411 = vmatprep.subr.mxu0 0.0
    %1412 = vmatpush1.msra.mxu0 %v1400
    %1413 = vmatprep.subr.mxu0 0.0
    %1414 = vmatpush1.msra.mxu0 %v1399
    %1415 = vmatprep.subr.mxu0 0.0
    %1416 = vmatpush1.msra.mxu0 %v1398
    %1417 = vmatprep.subr.mxu0 0.0
    %1418 = vmatpush1.msra.mxu0 %v1397
    %1419 = vmatprep.subr.mxu0 0.0
    %1420 = vmatpush1.msra.mxu0 %v1396
    %1421 = vmatprep.subr.mxu0 0.0
    %1422 = vmatpush1.msra.mxu0 %v1395
    %1423 = vmatprep.subr.mxu0 0.0
    %1424 = vmatpush1.msra.mxu0 %v1394
    %1425 = vmatprep.subr.mxu0 0.0
    %1426 = vmatpush1.msra.mxu0 %v1393
    %1427 = vmatprep.subr.mxu0 0.0
    %1428 = vmatpush1.msra.mxu0 %v1392
    %1429 = vmatprep.subr.mxu0 0.0
    %1430 = vmatpush1.msra.mxu0 %v1391
    %1431 = vmatprep.subr.mxu0 0.0
    %1432 = vmatpush1.msra.mxu0 %v1390
    %1433 = vmatprep.subr.mxu0 0.0
    %1434 = vmatpush1.msra.mxu0 %v1389
    %1435 = vmatprep.subr.mxu0 0.0
    %1436 = vmatpush1.msra.mxu0 %v1388
    %1437 = vmatprep.subr.mxu0 0.0
    %1438 = vmatpush1.msra.mxu0 %v1387
    %1439 = vmatprep.subr.mxu0 0.0
    %1440 = vmatpush1.msra.mxu0 %v1386
    %1441 = vmatprep.subr.mxu0 0.0
    %1442 = vmatpush2.msra.mxu0 0.0
    %1443 = vmatprep.subr.mxu0 0.0
    %1444 = vmatpush2.msra.mxu0 0.0
    %1445 = vmatprep.subr.mxu0 0.0
    %1446 = vmatpush2.msra.mxu0 0.0
    %1447 = vmatprep.subr.mxu0 0.0
    %1448 = vmatpush2.msra.mxu0 0.0
    %1449 = vmatprep.subr.mxu0 0.0
    %1450 = vmatpush2.msra.mxu0 0.0
    %1451 = vmatprep.subr.mxu0 0.0
    %1452 = vmatpush2.msra.mxu0 0.0
    %1453 = vmatprep.subr.mxu0 0.0
    %1454 = vmatpush2.msra.mxu0 0.0
    %1455 = vmatprep.subr.mxu0 0.0
    %1456 = vmatpush2.msra.mxu0 0.0
    %1457 = vmatprep.subr.mxu0 0.0
    %1458 = vmatpush2.msra.mxu0 0.0
    %1459 = vmatprep.subr.mxu0 0.0
    %1460 = vmatpush2.msra.mxu0 0.0
    %1461 = vmatprep.subr.mxu0 0.0
    %1462 = vmatpush2.msra.mxu0 0.0
    %1463 = vmatprep.subr.mxu0 0.0
    %1464 = vmatpush2.msra.mxu0 0.0
    %1465 = vmatprep.subr.mxu0 0.0
    %1466 = vmatpush2.msra.mxu0 0.0
    %1467 = vmatprep.subr.mxu0 0.0
    %1468 = vmatpush2.msra.mxu0 0.0
    %1469 = vmatprep.subr.mxu0 0.0
    %1470 = vmatpush2.msra.mxu0 0.0
    %1471 = vmatprep.subr.mxu0 0.0
    %1472 = vmatpush2.msra.mxu0 0.0
    %1473 = vmatprep.mubr.f32.mxu0 0.0
    %1474 = vmatmul.mubr.f32.gmra.mxu0 %v1385
    %v1475 = vpop.f32.mrf.mxu0
    %v1476 = vadd.f32 %v1407, %v1475
    %v1477 = vpop.f32.mrf.mxu0
    %1478 = vdwg.mxu0
    %1479 = vst [vmem:[#allocation8] sm:$0x3] %v1476
    // Predicated region
    $region38: #{tpu_custom_call.1} parent=1 // pred_check
      _
    $region39: #{tpu_custom_call.1} parent=1 // pred_check_branch
      %1481 = sbr.rel (0) target = $region41
    $region40: #{tpu_custom_call.1} parent=1 // pred_region
      %s1483 = ssub.s32 32, 32
      %1484 = vsyncadd [#allocation4], %s1483
      %s1486 = sshll.u32 [#allocation8], 4
      %s1487 = int_to_ptr.vmem [resolvable:$true] %s1486
      %1489 = dma.vmem_to_hbm [thread:$0]  %s1487, 32, %s6, [#allocation4]
    $region41: #{tpu_custom_call.1} parent=1 // pred_fallthru
      _
    // Predicated region
    $region42: #{tpu_custom_call.1} parent=1 // pred_check
      _
    $region43: #{tpu_custom_call.1} parent=1 // pred_check_branch
      %1491 = sbr.rel (0) target = $region45
    $region44: #{tpu_custom_call.1} parent=1 // pred_region
      %1492 = dma.done [#allocation4], 32
    $region45: #{tpu_custom_call.1} parent=1 // pred_fallthru
      _
    %1493 = vsyncpa [#allocation3], 1
    %1494 = vsyncpa [#allocation6], 1
    %1495 = vsyncpa [#allocation4], 1

</llo_original>
